<compile_context>
chip_gen: v7x
topology: tpu7x:2x2x1
jax: 0.10.0
libtpu: 0.0.40
codegen_flags: <defaults>
</compile_context>

<pallas_src>
import functools

import jax
import jax.numpy as jnp
from jax.experimental import pallas as pl
from jax.experimental.pallas import tpu as pltpu


# --------------------------------------------------------------------------- #
# Kernel                                                                      #
# --------------------------------------------------------------------------- #
def _edge_mlp_kernel(x_ref,
                     w1_ref, b1_ref,
                     w2_ref, b2_ref,
                     w3_ref, b3_ref,
                     w4_ref, b4_ref,
                     o_ref, *, num_slabs, slab_lanes):
    """Fused (Linear -> ReLU) x3 -> Linear on one lane-packed edge tile.

    Each row of x packs P edges side by side (P*F lanes), so per-edge Linear
    layers become matmuls against block-diagonal kron(I, W) weights.  The wide
    hidden layers (2 and 3) are evaluated slab-by-slab: `num_slabs` lane
    slices of width `slab_lanes` (vreg-aligned 128/256 multiples) each use one
    small kron(I_Q, W) weight instead of a single kron(I_P, W) matmul that is
    mostly structural zeros.  Matmul operands are cast to the weight dtype
    (bf16 fast path); bias, ReLU and accumulation stay f32 on the VPU.
    """
    x = x_ref[...]  # keep native dtype; only the dot operands get cast

    h = jnp.dot(x.astype(w1_ref.dtype), w1_ref[...],
                preferred_element_type=jnp.float32) + b1_ref[...]
    h = jnp.maximum(h, 0.0)

    # Hidden layers 2/3: short static slab loop over the same resident weight.
    slabs = [h[:, s * slab_lanes:(s + 1) * slab_lanes] for s in range(num_slabs)]

    def _apply(hs, w_ref, b_ref):
        out = jnp.dot(hs.astype(w_ref.dtype), w_ref[...],
                      preferred_element_type=jnp.float32) + b_ref[...]
        return jnp.maximum(out, 0.0)

    slabs = [_apply(hs, w2_ref, b2_ref) for hs in slabs]
    slabs = [_apply(hs, w3_ref, b3_ref) for hs in slabs]
    h = slabs[0] if num_slabs == 1 else jnp.concatenate(slabs, axis=-1)

    y = jnp.dot(h.astype(w4_ref.dtype), w4_ref[...],
                preferred_element_type=jnp.float32) + b4_ref[...]
    o_ref[...] = y.astype(o_ref.dtype)


# --------------------------------------------------------------------------- #
# Weight packing (done once, outside the per-call hot path)                   #
# --------------------------------------------------------------------------- #
def _largest_slab_pack(pack, hidden, target_lanes):
    """Largest q dividing `pack` with q*hidden <= target_lanes (q >= 1)."""
    best = 1
    for q in range(1, pack + 1):
        if pack % q == 0 and q * hidden <= target_lanes:
            best = q
    return best


def _pack_for_width(params, pack, w_dtype, slab_lanes):
    """Pack raw (W, b) params for a `pack`-edges-per-row lane layout."""
    w1, b1, w2, b2, w3, b3, w4, b4 = params
    hidden = w1.shape[1]
    slab_pack = _largest_slab_pack(pack, hidden, slab_lanes)
    num_slabs = pack // slab_pack

    def kron_pack(w, q):
        if q == 1:
            return w.astype(w_dtype)
        eye = jnp.eye(q, dtype=w.dtype)
        return jnp.kron(eye, w).astype(w_dtype)

    def tile_b(b, q):
        return jnp.tile(jnp.reshape(b, (1, -1)), (1, q)).astype(jnp.float32)

    packed = (kron_pack(w1, pack), tile_b(b1, pack),
              kron_pack(w2, slab_pack), tile_b(b2, slab_pack),
              kron_pack(w3, slab_pack), tile_b(b3, slab_pack),
              kron_pack(w4, pack), tile_b(b4, pack))
    return packed, num_slabs, slab_pack * hidden


def pack_params(params, *, use_bf16_matmul=True, slab_lanes=256):
    """Precompute kernel-ready weights.  Call once; reuse across forward calls.

    slab_lanes: MXU-native slab width for the hidden layers.  256 suits the
    2x256^2 MXU on v6e/v7x; use 128 on v5e (4x128^2 MXU).
    """
    w1 = params[0]
    feat = w1.shape[0]
    w_dtype = jnp.bfloat16 if use_bf16_matmul else w1.dtype
    pack = 128 // feat if (feat <= 128 and 128 % feat == 0) else 1
    # TODO(synk): feat that doesn't divide 128 falls back to pack=1 (correct but
    # lane-sparse -> much slower); consider asserting/logging in production.
    bulk, bulk_slabs, bulk_slab_lanes = _pack_for_width(params, pack, w_dtype,
                                                        slab_lanes)
    tail, tail_slabs, tail_slab_lanes = _pack_for_width(params, 1, w_dtype,
                                                        slab_lanes)
    return dict(P=pack, w_dtype=w_dtype,
                bulk=bulk, bulk_num_slabs=bulk_slabs,
                bulk_slab_lanes=bulk_slab_lanes,
                tail=tail, tail_num_slabs=tail_slabs,
                tail_slab_lanes=tail_slab_lanes)


# --------------------------------------------------------------------------- #
# pallas_call wrapper                                                         #
# --------------------------------------------------------------------------- #
def _resident(shape):
    # Constant index_map -> block index never changes, so the weight stays
    # VMEM-resident and is not re-DMA'd across grid steps.
    # TODO(synk): mark single-buffered (pipeline_mode=pl.Buffered(1)) once that
    # BlockSpec field is confirmed stable; saves ~0.5 MiB of double-buffer VMEM.
    return pl.BlockSpec(shape, lambda i: (0, 0))


def _run_packed_mlp(x_packed, packed_weights, *, num_slabs, slab_lanes,
                    tile_rows, out_dtype):
    rows, d_in = x_packed.shape
    d_h = packed_weights[0].shape[1]
    grid = (pl.cdiv(rows, tile_rows),)

    edge_spec = pl.BlockSpec((tile_rows, d_in), lambda i: (i, 0))

    io_itemsize = jnp.dtype(out_dtype).itemsize
    w_bytes = sum(int(w.size) * jnp.dtype(w.dtype).itemsize
                  for w in packed_weights)
    flops_per_row = 2 * (d_in * d_h                       # layer 1
                         + 2 * num_slabs * slab_lanes * slab_lanes  # layers 2,3
                         + d_h * d_in)                     # layer 4
    cost = pl.CostEstimate(
        flops=int(flops_per_row) * int(rows),
        bytes_accessed=2 * rows * d_in * io_itemsize + int(w_bytes),
        transcendentals=0,
    )

    kernel = functools.partial(_edge_mlp_kernel,
                               num_slabs=num_slabs, slab_lanes=slab_lanes)

    return pl.pallas_call(
        kernel,
        out_shape=jax.ShapeDtypeStruct((rows, d_in), out_dtype),
        grid=grid,
        in_specs=[
            edge_spec,                                             # edge tile
            _resident(packed_weights[0].shape), _resident(packed_weights[1].shape),
            _resident(packed_weights[2].shape), _resident(packed_weights[3].shape),
            _resident(packed_weights[4].shape), _resident(packed_weights[5].shape),
            _resident(packed_weights[6].shape), _resident(packed_weights[7].shape),
        ],
        out_specs=edge_spec,
        compiler_params=pltpu.CompilerParams(
            dimension_semantics=("parallel",),     # v7x: shard steps over both TCs
            vmem_limit_bytes=32 * 1024 * 1024,
        ),
        cost_estimate=cost,
    )(x_packed, *packed_weights)


def edge_decoder_forward(src, dst, edge_attr, u, batch, params=None, *,
                         packed=None, block_edges=16384, use_bf16_matmul=True,
                         slab_lanes=256):
    """Mirrors EdgeDecoderModel.forward: only edge_attr is consumed."""
    del src, dst, u, batch  # unused by the reference forward pass
    if packed is None:
        if params is None:
            raise ValueError("provide raw `params` or prepacked `packed` weights")
        packed = pack_params(params, use_bf16_matmul=use_bf16_matmul,
                             slab_lanes=slab_lanes)

    E, F = edge_attr.shape
    out_dtype = edge_attr.dtype
    P = packed["P"]

    outs = []
    E_bulk = (E // P) * P
    if E_bulk > 0:
        rows = E_bulk // P
        # Row-major reshape of a contiguous prefix is a free view; when
        # E % P == 0 the whole path is copy-free end to end (no pad, no slice).
        x_bulk = edge_attr if E_bulk == E else edge_attr[:E_bulk]
        x_bulk = x_bulk.reshape(rows, P * F)

        desired = max(8, (block_edges // P) // 8 * 8)
        if rows <= 8:
            tile_rows = rows                      # single full-extent block
        else:
            # Keep >= 2 grid steps (multiple of 8 rows) so v7x shards the
            # "parallel" axis over both TensorCores and DMA overlaps compute.
            half = (((rows + 1) // 2) + 7) // 8 * 8
            tile_rows = max(8, min(desired, half))

        out_bulk = _run_packed_mlp(
            x_bulk, packed["bulk"],
            num_slabs=packed["bulk_num_slabs"],
            slab_lanes=packed["bulk_slab_lanes"],
            tile_rows=tile_rows, out_dtype=out_dtype)
        outs.append(out_bulk.reshape(E_bulk, F))

    if E_bulk < E:
        # <= P-1 leftover edges: tiny unpacked call instead of padding/slicing
        # an extra full HBM pass over the edge tensor.
        x_tail = edge_attr[E_bulk:]
        out_tail = _run_packed_mlp(
            x_tail, packed["tail"],
            num_slabs=packed["tail_num_slabs"],
            slab_lanes=packed["tail_slab_lanes"],
            tile_rows=x_tail.shape[0], out_dtype=out_dtype)
        outs.append(out_tail)

    return outs[0] if len(outs) == 1 else jnp.concatenate(outs, axis=0)


# --------------------------------------------------------------------------- #
# Params / reference / self-test                                              #
# --------------------------------------------------------------------------- #
def init_params(key, feature_dim, hidden_dim, dtype=jnp.float32):
    """Deterministic PyTorch-Linear-style init: U(-1/sqrt(fan_in), 1/sqrt(fan_in))."""
    dims = [(feature_dim, hidden_dim),
            (hidden_dim, hidden_dim),
            (hidden_dim, hidden_dim),
            (hidden_dim, feature_dim)]
    params = []
    for fan_in, fan_out in dims:
        key, kw, kb = jax.random.split(key, 3)
        bound = 1.0 / jnp.sqrt(jnp.asarray(fan_in, jnp.float32))
        params.append(jax.random.uniform(kw, (fan_in, fan_out), dtype, -bound, bound))
        params.append(jax.random.uniform(kb, (1, fan_out), dtype, -bound, bound))
    return tuple(params)


def _reference(edge_attr, params):
    """Plain-JAX reference for correctness checking."""
    w1, b1, w2, b2, w3, b3, w4, b4 = params
    h = jnp.maximum(edge_attr @ w1 + b1, 0.0)
    h = jnp.maximum(h @ w2 + b2, 0.0)
    h = jnp.maximum(h @ w3 + b3, 0.0)
    return h @ w4 + b4


if __name__ == "__main__":
    feature_dim, hidden_dim = 8, 32
    num_edges = 200          # 192 packed-bulk edges + 8-edge tail

    key = jax.random.PRNGKey(0)
    key, k_edge, k_src, k_dst, k_u, k_p = jax.random.split(key, 6)

    edge_attr = jax.random.normal(k_edge, (num_edges, feature_dim), jnp.float32)
    src = jax.random.normal(k_src, (num_edges, feature_dim), jnp.float32)
    dst = jax.random.normal(k_dst, (num_edges, feature_dim), jnp.float32)
    u = jax.random.normal(k_u, (1, feature_dim), jnp.float32)
    batch = jnp.zeros((num_edges,), jnp.int32)

    params = init_params(k_p, feature_dim, hidden_dim)
    ref = _reference(edge_attr, params)

    # Exact path: f32 matmul operands; small block_edges forces a 2-step bulk
    # grid (tile of 8 packed rows + partial block) plus the tail call.
    packed_f32 = pack_params(params, use_bf16_matmul=False)
    out_f32 = edge_decoder_forward(src, dst, edge_attr, u, batch, params,
                                   packed=packed_f32, block_edges=128)
    out_f32 = jax.block_until_ready(out_f32)
    assert out_f32.shape == (num_edges, feature_dim)
    assert jnp.allclose(out_f32, ref, atol=1e-5, rtol=1e-5), "f32 path mismatch"

    # Fast path: bf16 MXU operands, default tiling, 2 hidden-layer lane slabs.
    packed_bf16 = pack_params(params, use_bf16_matmul=True)
    out_fast = edge_decoder_forward(src, dst, edge_attr, u, batch, params,
                                    packed=packed_bf16)
    out_fast = jax.block_until_ready(out_fast)
    assert out_fast.shape == (num_edges, feature_dim)
    assert jnp.allclose(out_fast, ref, atol=3e-2, rtol=3e-2), "bf16 path mismatch"

    # Copy-free path: E a multiple of 16 -> no tail call, single full-extent block.
    e2 = 64
    ref2 = _reference(edge_attr[:e2], params)
    out2 = edge_decoder_forward(src[:e2], dst[:e2], edge_attr[:e2], u, batch[:e2],
                                params, packed=packed_f32)
    out2 = jax.block_until_ready(out2)
    assert out2.shape == (e2, feature_dim)
    assert jnp.allclose(out2, ref2, atol=1e-5, rtol=1e-5), "aligned path mismatch"

    print("KERNEL_OK")
</pallas_src>

<mosaic_0001>
module attributes {stable_mosaic.version = 11 : i64} {
  func.func @_edge_mlp_kernel(%arg0: i32, %arg1: memref<8x128xf32, #tpu.memory_space<vmem>>, %arg2: memref<128x512xf32, #tpu.memory_space<vmem>>, %arg3: memref<1x512xf32, #tpu.memory_space<vmem>>, %arg4: memref<256x256xf32, #tpu.memory_space<vmem>>, %arg5: memref<1x256xf32, #tpu.memory_space<vmem>>, %arg6: memref<256x256xf32, #tpu.memory_space<vmem>>, %arg7: memref<1x256xf32, #tpu.memory_space<vmem>>, %arg8: memref<512x128xf32, #tpu.memory_space<vmem>>, %arg9: memref<1x128xf32, #tpu.memory_space<vmem>>, %arg10: memref<8x128xf32, #tpu.memory_space<vmem>>) attributes {dimension_semantics = [#tpu.dimension_semantics<parallel>], iteration_bounds = array<i64: 2>, scalar_prefetch = 0 : i64, scratch_operands = 0 : i64, tpu.core_type = #tpu.core_type<tc>, window_params = [{transform_indices = @transform_0, window_bounds = array<i64: 8, 128>}, {pipeline_mode = #tpu.pipeline_mode<synchronous>, transform_indices = @transform_1, window_bounds = array<i64: 128, 512>}, {pipeline_mode = #tpu.pipeline_mode<synchronous>, transform_indices = @transform_2, window_bounds = array<i64: 1, 512>}, {pipeline_mode = #tpu.pipeline_mode<synchronous>, transform_indices = @transform_3, window_bounds = array<i64: 256, 256>}, {pipeline_mode = #tpu.pipeline_mode<synchronous>, transform_indices = @transform_4, window_bounds = array<i64: 1, 256>}, {pipeline_mode = #tpu.pipeline_mode<synchronous>, transform_indices = @transform_5, window_bounds = array<i64: 256, 256>}, {pipeline_mode = #tpu.pipeline_mode<synchronous>, transform_indices = @transform_6, window_bounds = array<i64: 1, 256>}, {pipeline_mode = #tpu.pipeline_mode<synchronous>, transform_indices = @transform_7, window_bounds = array<i64: 512, 128>}, {pipeline_mode = #tpu.pipeline_mode<synchronous>, transform_indices = @transform_8, window_bounds = array<i64: 1, 128>}, {transform_indices = @transform_9, window_bounds = array<i64: 8, 128>}]} {
    %c0 = arith.constant 0 : index
    %c0_0 = arith.constant 0 : index
    %0 = vector.load %arg1[%c0, %c0_0] : memref<8x128xf32, #tpu.memory_space<vmem>>, vector<8x128xf32>
    %c0_1 = arith.constant 0 : index
    %c0_2 = arith.constant 0 : index
    %1 = vector.load %arg2[%c0_1, %c0_2] : memref<128x512xf32, #tpu.memory_space<vmem>>, vector<128x512xf32>
    %cst = arith.constant dense<0.000000e+00> : vector<8x512xf32>
    %2 = tpu.matmul %0, %1, %cst {dimension_numbers = #tpu.dot_dimension_numbers<[1], [0], [0], [1], [0, 0, 1, 1], [], []>} : vector<8x128xf32>, vector<128x512xf32>, vector<8x512xf32> -> vector<8x512xf32>
    %c0_3 = arith.constant 0 : index
    %c0_4 = arith.constant 0 : index
    %3 = vector.load %arg3[%c0_3, %c0_4] : memref<1x512xf32, #tpu.memory_space<vmem>>, vector<1x512xf32>
    %4 = vector.broadcast %3 : vector<1x512xf32> to vector<8x512xf32>
    %5 = arith.addf %2, %4 : vector<8x512xf32>
    %cst_5 = arith.constant 0.000000e+00 : f32
    %6 = vector.broadcast %cst_5 : f32 to vector<8x512xf32>
    %7 = arith.maximumf %5, %6 : vector<8x512xf32>
    %8 = vector.extract_strided_slice %7 {offsets = [0, 0], sizes = [8, 256], strides = [1, 1]} : vector<8x512xf32> to vector<8x256xf32>
    %9 = vector.extract_strided_slice %7 {offsets = [0, 256], sizes = [8, 256], strides = [1, 1]} : vector<8x512xf32> to vector<8x256xf32>
    %c0_6 = arith.constant 0 : index
    %c0_7 = arith.constant 0 : index
    %10 = vector.load %arg4[%c0_6, %c0_7] : memref<256x256xf32, #tpu.memory_space<vmem>>, vector<256x256xf32>
    %cst_8 = arith.constant dense<0.000000e+00> : vector<8x256xf32>
    %11 = tpu.matmul %8, %10, %cst_8 {dimension_numbers = #tpu.dot_dimension_numbers<[1], [0], [0], [1], [0, 0, 1, 1], [], []>} : vector<8x256xf32>, vector<256x256xf32>, vector<8x256xf32> -> vector<8x256xf32>
    %c0_9 = arith.constant 0 : index
    %c0_10 = arith.constant 0 : index
    %12 = vector.load %arg5[%c0_9, %c0_10] : memref<1x256xf32, #tpu.memory_space<vmem>>, vector<1x256xf32>
    %13 = vector.broadcast %12 : vector<1x256xf32> to vector<8x256xf32>
    %14 = arith.addf %11, %13 : vector<8x256xf32>
    %cst_11 = arith.constant 0.000000e+00 : f32
    %15 = vector.broadcast %cst_11 : f32 to vector<8x256xf32>
    %16 = arith.maximumf %14, %15 : vector<8x256xf32>
    %c0_12 = arith.constant 0 : index
    %c0_13 = arith.constant 0 : index
    %17 = vector.load %arg4[%c0_12, %c0_13] : memref<256x256xf32, #tpu.memory_space<vmem>>, vector<256x256xf32>
    %cst_14 = arith.constant dense<0.000000e+00> : vector<8x256xf32>
    %18 = tpu.matmul %9, %17, %cst_14 {dimension_numbers = #tpu.dot_dimension_numbers<[1], [0], [0], [1], [0, 0, 1, 1], [], []>} : vector<8x256xf32>, vector<256x256xf32>, vector<8x256xf32> -> vector<8x256xf32>
    %c0_15 = arith.constant 0 : index
    %c0_16 = arith.constant 0 : index
    %19 = vector.load %arg5[%c0_15, %c0_16] : memref<1x256xf32, #tpu.memory_space<vmem>>, vector<1x256xf32>
    %20 = vector.broadcast %19 : vector<1x256xf32> to vector<8x256xf32>
    %21 = arith.addf %18, %20 : vector<8x256xf32>
    %cst_17 = arith.constant 0.000000e+00 : f32
    %22 = vector.broadcast %cst_17 : f32 to vector<8x256xf32>
    %23 = arith.maximumf %21, %22 : vector<8x256xf32>
    %c0_18 = arith.constant 0 : index
    %c0_19 = arith.constant 0 : index
    %24 = vector.load %arg6[%c0_18, %c0_19] : memref<256x256xf32, #tpu.memory_space<vmem>>, vector<256x256xf32>
    %cst_20 = arith.constant dense<0.000000e+00> : vector<8x256xf32>
    %25 = tpu.matmul %16, %24, %cst_20 {dimension_numbers = #tpu.dot_dimension_numbers<[1], [0], [0], [1], [0, 0, 1, 1], [], []>} : vector<8x256xf32>, vector<256x256xf32>, vector<8x256xf32> -> vector<8x256xf32>
    %c0_21 = arith.constant 0 : index
    %c0_22 = arith.constant 0 : index
    %26 = vector.load %arg7[%c0_21, %c0_22] : memref<1x256xf32, #tpu.memory_space<vmem>>, vector<1x256xf32>
    %27 = vector.broadcast %26 : vector<1x256xf32> to vector<8x256xf32>
    %28 = arith.addf %25, %27 : vector<8x256xf32>
    %cst_23 = arith.constant 0.000000e+00 : f32
    %29 = vector.broadcast %cst_23 : f32 to vector<8x256xf32>
    %30 = arith.maximumf %28, %29 : vector<8x256xf32>
    %c0_24 = arith.constant 0 : index
    %c0_25 = arith.constant 0 : index
    %31 = vector.load %arg6[%c0_24, %c0_25] : memref<256x256xf32, #tpu.memory_space<vmem>>, vector<256x256xf32>
    %cst_26 = arith.constant dense<0.000000e+00> : vector<8x256xf32>
    %32 = tpu.matmul %23, %31, %cst_26 {dimension_numbers = #tpu.dot_dimension_numbers<[1], [0], [0], [1], [0, 0, 1, 1], [], []>} : vector<8x256xf32>, vector<256x256xf32>, vector<8x256xf32> -> vector<8x256xf32>
    %c0_27 = arith.constant 0 : index
    %c0_28 = arith.constant 0 : index
    %33 = vector.load %arg7[%c0_27, %c0_28] : memref<1x256xf32, #tpu.memory_space<vmem>>, vector<1x256xf32>
    %34 = vector.broadcast %33 : vector<1x256xf32> to vector<8x256xf32>
    %35 = arith.addf %32, %34 : vector<8x256xf32>
    %cst_29 = arith.constant 0.000000e+00 : f32
    %36 = vector.broadcast %cst_29 : f32 to vector<8x256xf32>
    %37 = arith.maximumf %35, %36 : vector<8x256xf32>
    %38 = tpu.concatenate %30, %37 in 1 : vector<8x256xf32>, vector<8x256xf32> -> vector<8x512xf32>
    %c0_30 = arith.constant 0 : index
    %c0_31 = arith.constant 0 : index
    %39 = vector.load %arg8[%c0_30, %c0_31] : memref<512x128xf32, #tpu.memory_space<vmem>>, vector<512x128xf32>
    %cst_32 = arith.constant dense<0.000000e+00> : vector<8x128xf32>
    %40 = tpu.matmul %38, %39, %cst_32 {dimension_numbers = #tpu.dot_dimension_numbers<[1], [0], [0], [1], [0, 0, 1, 1], [], []>} : vector<8x512xf32>, vector<512x128xf32>, vector<8x128xf32> -> vector<8x128xf32>
    %c0_33 = arith.constant 0 : index
    %c0_34 = arith.constant 0 : index
    %41 = vector.load %arg9[%c0_33, %c0_34] : memref<1x128xf32, #tpu.memory_space<vmem>>, vector<1x128xf32>
    %42 = vector.broadcast %41 : vector<1x128xf32> to vector<8x128xf32>
    %43 = arith.addf %40, %42 : vector<8x128xf32>
    %c0_35 = arith.constant 0 : index
    %c0_36 = arith.constant 0 : index
    %44 = vector.load %arg10[%c0_35, %c0_36] : memref<8x128xf32, #tpu.memory_space<vmem>>, vector<8x128xf32>
    tpu.vector_store %arg10[%c0_35, %c0_36], %43 {strides = array<i32>} : memref<8x128xf32, #tpu.memory_space<vmem>>, vector<8x128xf32>,
    return
  }
  func.func @transform_0(%arg0: i32) -> (i32, i32) {
    %c0_i32 = arith.constant 0 : i32
    %c0_i32_0 = arith.constant 0 : i32
    return %arg0, %c0_i32 : i32, i32
  }
  func.func @transform_1(%arg0: i32) -> (i32, i32) {
    %c0_i32 = arith.constant 0 : i32
    %c0_i32_0 = arith.constant 0 : i32
    %c0_i32_1 = arith.constant 0 : i32
    return %c0_i32, %c0_i32_0 : i32, i32
  }
  func.func @transform_2(%arg0: i32) -> (i32, i32) {
    %c0_i32 = arith.constant 0 : i32
    %c0_i32_0 = arith.constant 0 : i32
    %c0_i32_1 = arith.constant 0 : i32
    return %c0_i32, %c0_i32_0 : i32, i32
  }
  func.func @transform_3(%arg0: i32) -> (i32, i32) {
    %c0_i32 = arith.constant 0 : i32
    %c0_i32_0 = arith.constant 0 : i32
    %c0_i32_1 = arith.constant 0 : i32
    return %c0_i32, %c0_i32_0 : i32, i32
  }
  func.func @transform_4(%arg0: i32) -> (i32, i32) {
    %c0_i32 = arith.constant 0 : i32
    %c0_i32_0 = arith.constant 0 : i32
    %c0_i32_1 = arith.constant 0 : i32
    return %c0_i32, %c0_i32_0 : i32, i32
  }
  func.func @transform_5(%arg0: i32) -> (i32, i32) {
    %c0_i32 = arith.constant 0 : i32
    %c0_i32_0 = arith.constant 0 : i32
    %c0_i32_1 = arith.constant 0 : i32
    return %c0_i32, %c0_i32_0 : i32, i32
  }
  func.func @transform_6(%arg0: i32) -> (i32, i32) {
    %c0_i32 = arith.constant 0 : i32
    %c0_i32_0 = arith.constant 0 : i32
    %c0_i32_1 = arith.constant 0 : i32
    return %c0_i32, %c0_i32_0 : i32, i32
  }
  func.func @transform_7(%arg0: i32) -> (i32, i32) {
    %c0_i32 = arith.constant 0 : i32
    %c0_i32_0 = arith.constant 0 : i32
    %c0_i32_1 = arith.constant 0 : i32
    return %c0_i32, %c0_i32_0 : i32, i32
  }
  func.func @transform_8(%arg0: i32) -> (i32, i32) {
    %c0_i32 = arith.constant 0 : i32
    %c0_i32_0 = arith.constant 0 : i32
    %c0_i32_1 = arith.constant 0 : i32
    return %c0_i32, %c0_i32_0 : i32, i32
  }
  func.func @transform_9(%arg0: i32) -> (i32, i32) {
    %c0_i32 = arith.constant 0 : i32
    %c0_i32_0 = arith.constant 0 : i32
    return %arg0, %c0_i32 : i32, i32
  }
}

</mosaic_0001>

<llo_original>
// kernel: tpu_custom_call.1
$region0: #{tpu_custom_call.1}
  #allocation0 [shape = 'u32[]', space=smem, size = 0x4, offset = 0x4, fixed_abs, tag = 'smem constant byte address 0x4 - core index']
  #allocation1 [shape = 'u32[144,128]{1,0:T(1,128)}', space=vmem, size = 0x12000, scoped, tag = 'internal scratch']
  %s0 = inlined_call_operand.hbm [shape: f32[12,128], index: 0, kind: input, shape index: {}]
  %s1 = inlined_call_operand.hbm [shape: f32[128,512], index: 1, kind: input, shape index: {}]
  %s2 = inlined_call_operand.vmem [shape: f32[1,512], index: 2, kind: input, shape index: {}]
  %s3 = inlined_call_operand.hbm [shape: f32[256,256], index: 3, kind: input, shape index: {}]
  %s4 = inlined_call_operand.vmem [shape: f32[1,256], index: 4, kind: input, shape index: {}]
  %s5 = inlined_call_operand.hbm [shape: f32[256,256], index: 5, kind: input, shape index: {}]
  %s6 = inlined_call_operand.vmem [shape: f32[1,256], index: 6, kind: input, shape index: {}]
  %s7 = inlined_call_operand.hbm [shape: f32[512,128], index: 7, kind: input, shape index: {}]
  %s8 = inlined_call_operand.vmem [shape: f32[1,128], index: 8, kind: input, shape index: {}]
  %s9 = inlined_call_operand.hbm [shape: f32[12,128], index: 9, kind: output, shape index: {}]
  %s10 = sld [smem:[#allocation0]]
  $region89: #{tpu_custom_call.1} parent=0
    _
  %s12 = ssub.s32 1, %s10
  %s13 = scalar_select 0, %s12, %s10
  $region1: #{tpu_custom_call.1} parent=0
    #allocation2 [shape = 'u8[8192]{0}', space=vmem, size = 0x2000, scoped, tag = 'input window, operand 0']
    #allocation3 [shape = 's32[2]{0}', space=sflag, size = 0x8, scoped, tag = 'scoped memory for tpu_custom_call.1']
    #allocation4 [shape = 's32[2]{0}', space=sflag, size = 0x8, scoped, tag = 'scoped memory for tpu_custom_call.1']
    #allocation5 [shape = 'u8[262144]{0}', space=vmem, size = 0x40000, scoped, tag = 'input window, operand 1, single buffered']
    #allocation6 [shape = 's32[1]{0}', space=sflag, size = 0x4, scoped, tag = 'scoped memory for tpu_custom_call.1']
    #allocation7 [shape = 'u8[262144]{0}', space=vmem, size = 0x40000, scoped, tag = 'input window, operand 3, single buffered']
    #allocation8 [shape = 'u8[262144]{0}', space=vmem, size = 0x40000, scoped, tag = 'input window, operand 5, single buffered']
    #allocation9 [shape = 's32[1]{0}', space=sflag, size = 0x4, scoped, tag = 'scoped memory for tpu_custom_call.1']
    #allocation10 [shape = 'u8[262144]{0}', space=vmem, size = 0x40000, scoped, tag = 'input window, operand 7, single buffered']
    #allocation11 [shape = 'u8[8192]{0}', space=vmem, size = 0x2000, scoped, tag = 'output window, operand 0']
    %14 = vsyncpa [#allocation3], 0
    %s15 = scalar_lea.sflag [#allocation3], 1
    %16 = vsyncpa %s15, 0
    %17 = vsyncpa [#allocation6], 0
    %18 = vsyncpa [#allocation9], 0
    %19 = vsyncpa [#allocation4], 0
    %s20 = scalar_lea.sflag [#allocation4], 1
    %21 = vsyncpa %s20, 0
    loop: start=0, step=1, limit=4
    $region2: #{tpu_custom_call.1} parent=1 // loop_pre_header
      _
    $region3: #{tpu_custom_call.1} parent=1 // loop_header
      %s23 = sphi 0, %s27
      %p24 = scmp.ge.s32.totalorder %s23, 4
      %s33 = sphi 0, %s35
      %s36 = sphi 0, %s33
      %s37 = sphi 0, %s36
      %s53 = sphi 0, %s37
      %s57 = sphi 0, %s57
      %s59 = sphi 0, %s57
      %s60 = sphi 0, %s59
      %s74 = sphi 0, %s60
      %s78 = sphi 0, %s78
      %s80 = sphi 0, %s78
      %s81 = sphi 0, %s80
      %s95 = sphi 0, %s81
      %s99 = sphi 0, %s99
      %s101 = sphi 0, %s99
      %s102 = sphi 0, %s101
      %s116 = sphi 0, %s102
      %s120 = sphi 0, %s120
      %s122 = sphi 0, %s120
      %s123 = sphi 0, %s122
      %s137 = sphi 0, %s123
      %s141 = sphi 0, %s141
      %s143 = sphi 0, %s141
      %s144 = sphi 0, %s143
      %s158 = sphi 0, %s144
      %s162 = sphi 0, %s162
      %s164 = sphi 0, %s162
      %s165 = sphi 0, %s164
      %s179 = sphi 0, %s165
      %s183 = sphi 0, %s183
      %s185 = sphi 0, %s183
      %s186 = sphi 0, %s185
      %s200 = sphi 0, %s186
      %s204 = sphi 0, %s204
      %s206 = sphi 0, %s204
      %s207 = sphi 0, %s206
      %s221 = sphi 0, %s207
      %s227 = sphi 0, %s229
      %s230 = sphi 0, %s227
      %s231 = sphi 0, %s230
      %s247 = sphi 0, %s231
    $region4: #{tpu_custom_call.1} parent=1 // loop_header_branch
      %26 = sbr.rel (%p24) target = $region8
    $region5: #{tpu_custom_call.1} parent=1 // loop_body
      %s28 = ssub.s32 %s23, 1
      %s29 = ssub.s32 %s23, 2
      %s30 = sadd.s32 %s23, 1
      %s31 = ssub.s32 %s23, %s30
      %p32 = scmp.eq.s32.totalorder %s31, 0
      %s34 = sadd.s32 %s33, 1
      %s35 = scalar_select %p32, %s33, %s34
      %p38 = pneg %p32
      %p39 = scmp.eq.s32.totalorder %s23, 1
      %p40 = por %p38, %p39
      %p41 = scmp.ne.s32.totalorder %s33, %s36
      %p42 = scmp.eq.s32.totalorder %s23, 0
      %p43 = por %p41, %p42
      %p44 = scmp.ne.s32.totalorder %s33, %s36
      %p45 = scmp.eq.s32.totalorder %s28, 1
      %p46 = por %p44, %p45
      %p47 = scmp.ne.s32.totalorder %s36, %s37
      %p48 = scmp.eq.s32.totalorder %s28, 0
      %p49 = por %p47, %p48
      %p50 = scmp.ne.s32.totalorder %s36, %s37
      %p51 = scmp.eq.s32.totalorder %s29, 1
      %p52 = por %p50, %p51
      %p54 = scmp.ne.s32.totalorder %s37, %s53
      %p55 = scmp.eq.s32.totalorder %s29, 0
      %p56 = por %p54, %p55
      %s58 = sadd.s32 %s57, 1
      %p61 = scmp.eq.s32.totalorder %s23, 1
      %p62 = scmp.ne.s32.totalorder %s57, %s59
      %p63 = scmp.eq.s32.totalorder %s23, 0
      %p64 = por %p62, %p63
      %p65 = scmp.ne.s32.totalorder %s57, %s59
      %p66 = scmp.eq.s32.totalorder %s28, 1
      %p67 = por %p65, %p66
      %p68 = scmp.ne.s32.totalorder %s59, %s60
      %p69 = scmp.eq.s32.totalorder %s28, 0
      %p70 = por %p68, %p69
      %p71 = scmp.ne.s32.totalorder %s59, %s60
      %p72 = scmp.eq.s32.totalorder %s29, 1
      %p73 = por %p71, %p72
      %p75 = scmp.ne.s32.totalorder %s60, %s74
      %p76 = scmp.eq.s32.totalorder %s29, 0
      %p77 = por %p75, %p76
      %s79 = sadd.s32 %s78, 1
      %p82 = scmp.eq.s32.totalorder %s23, 1
      %p83 = scmp.ne.s32.totalorder %s78, %s80
      %p84 = scmp.eq.s32.totalorder %s23, 0
      %p85 = por %p83, %p84
      %p86 = scmp.ne.s32.totalorder %s78, %s80
      %p87 = scmp.eq.s32.totalorder %s28, 1
      %p88 = por %p86, %p87
      %p89 = scmp.ne.s32.totalorder %s80, %s81
      %p90 = scmp.eq.s32.totalorder %s28, 0
      %p91 = por %p89, %p90
      %p92 = scmp.ne.s32.totalorder %s80, %s81
      %p93 = scmp.eq.s32.totalorder %s29, 1
      %p94 = por %p92, %p93
      %p96 = scmp.ne.s32.totalorder %s81, %s95
      %p97 = scmp.eq.s32.totalorder %s29, 0
      %p98 = por %p96, %p97
      %s100 = sadd.s32 %s99, 1
      %p103 = scmp.eq.s32.totalorder %s23, 1
      %p104 = scmp.ne.s32.totalorder %s99, %s101
      %p105 = scmp.eq.s32.totalorder %s23, 0
      %p106 = por %p104, %p105
      %p107 = scmp.ne.s32.totalorder %s99, %s101
      %p108 = scmp.eq.s32.totalorder %s28, 1
      %p109 = por %p107, %p108
      %p110 = scmp.ne.s32.totalorder %s101, %s102
      %p111 = scmp.eq.s32.totalorder %s28, 0
      %p112 = por %p110, %p111
      %p113 = scmp.ne.s32.totalorder %s101, %s102
      %p114 = scmp.eq.s32.totalorder %s29, 1
      %p115 = por %p113, %p114
      %p117 = scmp.ne.s32.totalorder %s102, %s116
      %p118 = scmp.eq.s32.totalorder %s29, 0
      %p119 = por %p117, %p118
      %s121 = sadd.s32 %s120, 1
      %p124 = scmp.eq.s32.totalorder %s23, 1
      %p125 = scmp.ne.s32.totalorder %s120, %s122
      %p126 = scmp.eq.s32.totalorder %s23, 0
      %p127 = por %p125, %p126
      %p128 = scmp.ne.s32.totalorder %s120, %s122
      %p129 = scmp.eq.s32.totalorder %s28, 1
      %p130 = por %p128, %p129
      %p131 = scmp.ne.s32.totalorder %s122, %s123
      %p132 = scmp.eq.s32.totalorder %s28, 0
      %p133 = por %p131, %p132
      %p134 = scmp.ne.s32.totalorder %s122, %s123
      %p135 = scmp.eq.s32.totalorder %s29, 1
      %p136 = por %p134, %p135
      %p138 = scmp.ne.s32.totalorder %s123, %s137
      %p139 = scmp.eq.s32.totalorder %s29, 0
      %p140 = por %p138, %p139
      %s142 = sadd.s32 %s141, 1
      %p145 = scmp.eq.s32.totalorder %s23, 1
      %p146 = scmp.ne.s32.totalorder %s141, %s143
      %p147 = scmp.eq.s32.totalorder %s23, 0
      %p148 = por %p146, %p147
      %p149 = scmp.ne.s32.totalorder %s141, %s143
      %p150 = scmp.eq.s32.totalorder %s28, 1
      %p151 = por %p149, %p150
      %p152 = scmp.ne.s32.totalorder %s143, %s144
      %p153 = scmp.eq.s32.totalorder %s28, 0
      %p154 = por %p152, %p153
      %p155 = scmp.ne.s32.totalorder %s143, %s144
      %p156 = scmp.eq.s32.totalorder %s29, 1
      %p157 = por %p155, %p156
      %p159 = scmp.ne.s32.totalorder %s144, %s158
      %p160 = scmp.eq.s32.totalorder %s29, 0
      %p161 = por %p159, %p160
      %s163 = sadd.s32 %s162, 1
      %p166 = scmp.eq.s32.totalorder %s23, 1
      %p167 = scmp.ne.s32.totalorder %s162, %s164
      %p168 = scmp.eq.s32.totalorder %s23, 0
      %p169 = por %p167, %p168
      %p170 = scmp.ne.s32.totalorder %s162, %s164
      %p171 = scmp.eq.s32.totalorder %s28, 1
      %p172 = por %p170, %p171
      %p173 = scmp.ne.s32.totalorder %s164, %s165
      %p174 = scmp.eq.s32.totalorder %s28, 0
      %p175 = por %p173, %p174
      %p176 = scmp.ne.s32.totalorder %s164, %s165
      %p177 = scmp.eq.s32.totalorder %s29, 1
      %p178 = por %p176, %p177
      %p180 = scmp.ne.s32.totalorder %s165, %s179
      %p181 = scmp.eq.s32.totalorder %s29, 0
      %p182 = por %p180, %p181
      %s184 = sadd.s32 %s183, 1
      %p187 = scmp.eq.s32.totalorder %s23, 1
      %p188 = scmp.ne.s32.totalorder %s183, %s185
      %p189 = scmp.eq.s32.totalorder %s23, 0
      %p190 = por %p188, %p189
      %p191 = scmp.ne.s32.totalorder %s183, %s185
      %p192 = scmp.eq.s32.totalorder %s28, 1
      %p193 = por %p191, %p192
      %p194 = scmp.ne.s32.totalorder %s185, %s186
      %p195 = scmp.eq.s32.totalorder %s28, 0
      %p196 = por %p194, %p195
      %p197 = scmp.ne.s32.totalorder %s185, %s186
      %p198 = scmp.eq.s32.totalorder %s29, 1
      %p199 = por %p197, %p198
      %p201 = scmp.ne.s32.totalorder %s186, %s200
      %p202 = scmp.eq.s32.totalorder %s29, 0
      %p203 = por %p201, %p202
      %s205 = sadd.s32 %s204, 1
      %p208 = scmp.eq.s32.totalorder %s23, 1
      %p209 = scmp.ne.s32.totalorder %s204, %s206
      %p210 = scmp.eq.s32.totalorder %s23, 0
      %p211 = por %p209, %p210
      %p212 = scmp.ne.s32.totalorder %s204, %s206
      %p213 = scmp.eq.s32.totalorder %s28, 1
      %p214 = por %p212, %p213
      %p215 = scmp.ne.s32.totalorder %s206, %s207
      %p216 = scmp.eq.s32.totalorder %s28, 0
      %p217 = por %p215, %p216
      %p218 = scmp.ne.s32.totalorder %s206, %s207
      %p219 = scmp.eq.s32.totalorder %s29, 1
      %p220 = por %p218, %p219
      %p222 = scmp.ne.s32.totalorder %s207, %s221
      %p223 = scmp.eq.s32.totalorder %s29, 0
      %p224 = por %p222, %p223
      %s225 = ssub.s32 %s23, %s30
      %p226 = scmp.eq.s32.totalorder %s225, 0
      %s228 = sadd.s32 %s227, 1
      %s229 = scalar_select %p226, %s227, %s228
      %p232 = pneg %p226
      %p233 = scmp.eq.s32.totalorder %s23, 1
      %p234 = por %p232, %p233
      %p235 = scmp.ne.s32.totalorder %s227, %s230
      %p236 = scmp.eq.s32.totalorder %s23, 0
      %p237 = por %p235, %p236
      %p238 = scmp.ne.s32.totalorder %s227, %s230
      %p239 = scmp.eq.s32.totalorder %s28, 1
      %p240 = por %p238, %p239
      %p241 = scmp.ne.s32.totalorder %s230, %s231
      %p242 = scmp.eq.s32.totalorder %s28, 0
      %p243 = por %p241, %p242
      %p244 = scmp.ne.s32.totalorder %s230, %s231
      %p245 = scmp.eq.s32.totalorder %s29, 1
      %p246 = por %p244, %p245
      %p248 = scmp.ne.s32.totalorder %s231, %s247
      %p249 = scmp.eq.s32.totalorder %s29, 0
      %p250 = por %p248, %p249
      %p251 = scmp.le.s32.totalorder 1, %s23
      %p252 = scmp.lt.s32.totalorder %s23, 3
      %p253 = pnand %p251, %p252
      %p254 = pneg %p253
      // Predicated region
      $region9: #{tpu_custom_call.1} parent=5 // pred_check
        _
      $region10: #{tpu_custom_call.1} parent=5 // pred_check_branch
        %256 = sbr.rel (%p253) target = $region12
      $region11: #{tpu_custom_call.1} parent=5 // pred_region
        %s257 = ssub.s32 %s23, 1
        // Predicated region
        $region13: #{tpu_custom_call.1} parent=11 // pred_check
          %p258 = pneg %p70
        $region14: #{tpu_custom_call.1} parent=11 // pred_check_branch
          %260 = sbr.rel (%p258) target = $region16
        $region15: #{tpu_custom_call.1} parent=11 // pred_region
          %s262 = ssub.s32 8192, 8192
          %263 = vsyncadd [#allocation6], %s262
          %s264 = sshll.u32 [#allocation5], 4
          %s265 = int_to_ptr.vmem [resolvable:$true] %s264
          %270 = dma.hbm_to_vmem [thread:$0]  %s1, 8192, %s265, [#allocation6], 512, 512, 32
        $region16: #{tpu_custom_call.1} parent=11 // pred_fallthru
          _
        // Predicated region
        $region17: #{tpu_custom_call.1} parent=11 // pred_check
          %p271 = pneg %p91
        $region18: #{tpu_custom_call.1} parent=11 // pred_check_branch
          %273 = sbr.rel (%p271) target = $region20
        $region19: #{tpu_custom_call.1} parent=11 // pred_region
          _
        $region20: #{tpu_custom_call.1} parent=11 // pred_fallthru
          _
        // Predicated region
        $region21: #{tpu_custom_call.1} parent=11 // pred_check
          %p274 = pneg %p112
        $region22: #{tpu_custom_call.1} parent=11 // pred_check_branch
          %276 = sbr.rel (%p274) target = $region24
        $region23: #{tpu_custom_call.1} parent=11 // pred_region
          %s278 = ssub.s32 8192, 8192
          %279 = vsyncadd [#allocation6], %s278
          %s280 = sshll.u32 [#allocation7], 4
          %s281 = int_to_ptr.vmem [resolvable:$true] %s280
          %286 = dma.hbm_to_vmem [thread:$0]  %s3, 8192, %s281, [#allocation6], 256, 256, 16
        $region24: #{tpu_custom_call.1} parent=11 // pred_fallthru
          _
        // Predicated region
        $region25: #{tpu_custom_call.1} parent=11 // pred_check
          %p287 = pneg %p133
        $region26: #{tpu_custom_call.1} parent=11 // pred_check_branch
          %289 = sbr.rel (%p287) target = $region28
        $region27: #{tpu_custom_call.1} parent=11 // pred_region
          _
        $region28: #{tpu_custom_call.1} parent=11 // pred_fallthru
          _
        // Predicated region
        $region29: #{tpu_custom_call.1} parent=11 // pred_check
          %p290 = pneg %p154
        $region30: #{tpu_custom_call.1} parent=11 // pred_check_branch
          %292 = sbr.rel (%p290) target = $region32
        $region31: #{tpu_custom_call.1} parent=11 // pred_region
          %s294 = ssub.s32 8192, 8192
          %295 = vsyncadd [#allocation9], %s294
          %s296 = sshll.u32 [#allocation8], 4
          %s297 = int_to_ptr.vmem [resolvable:$true] %s296
          %302 = dma.hbm_to_vmem [thread:$0]  %s5, 8192, %s297, [#allocation9], 256, 256, 16
        $region32: #{tpu_custom_call.1} parent=11 // pred_fallthru
          _
        // Predicated region
        $region33: #{tpu_custom_call.1} parent=11 // pred_check
          %p303 = pneg %p175
        $region34: #{tpu_custom_call.1} parent=11 // pred_check_branch
          %305 = sbr.rel (%p303) target = $region36
        $region35: #{tpu_custom_call.1} parent=11 // pred_region
          _
        $region36: #{tpu_custom_call.1} parent=11 // pred_fallthru
          _
        // Predicated region
        $region37: #{tpu_custom_call.1} parent=11 // pred_check
          %p306 = pneg %p196
        $region38: #{tpu_custom_call.1} parent=11 // pred_check_branch
          %308 = sbr.rel (%p306) target = $region40
        $region39: #{tpu_custom_call.1} parent=11 // pred_region
          %s310 = ssub.s32 8192, 8192
          %311 = vsyncadd [#allocation9], %s310
          %s312 = sshll.u32 [#allocation10], 4
          %s313 = int_to_ptr.vmem [resolvable:$true] %s312
          %318 = dma.hbm_to_vmem [thread:$0]  %s7, 8192, %s313, [#allocation9], 128, 128, 8
        $region40: #{tpu_custom_call.1} parent=11 // pred_fallthru
          _
        // Predicated region
        $region41: #{tpu_custom_call.1} parent=11 // pred_check
          %p319 = pneg %p217
        $region42: #{tpu_custom_call.1} parent=11 // pred_check_branch
          %321 = sbr.rel (%p319) target = $region44
        $region43: #{tpu_custom_call.1} parent=11 // pred_region
          _
        $region44: #{tpu_custom_call.1} parent=11 // pred_fallthru
          _
      $region12: #{tpu_custom_call.1} parent=5 // pred_fallthru
        _
      %p322 = scmp.lt.s32.totalorder %s23, 2
      // Predicated region
      $region45: #{tpu_custom_call.1} parent=5 // pred_check
        %p323 = pneg %p322
      $region46: #{tpu_custom_call.1} parent=5 // pred_check_branch
        %325 = sbr.rel (%p323) target = $region48
      $region47: #{tpu_custom_call.1} parent=5 // pred_region
        // Predicated region
        $region49: #{tpu_custom_call.1} parent=47 // pred_check
          %p326 = pneg %p43
        $region50: #{tpu_custom_call.1} parent=47 // pred_check_branch
          %328 = sbr.rel (%p326) target = $region52
        $region51: #{tpu_custom_call.1} parent=47 // pred_region
          %s329 = sand.u32 %s33, 1
          %s330 = scalar_lea.sflag [#allocation3], %s329
          %s331 = sand.u32 %s33, 1
          %s332 = smul.addr %s331, 8
          %s333 = scalar_lea.vmem [#allocation2], %s332
          %s335 = ssub.s32 128, 128
          %336 = vsyncadd %s330, %s335
          %s337 = smul.addr %s23, 128
          %s338 = scalar_lea.hbm %s0, %s337
          %s340 = sshll.u32 %s333, 4
          %s341 = int_to_ptr.vmem [resolvable:$true] %s340
          %343 = dma.hbm_to_vmem [thread:$0]  %s338, 128, %s341, %s330
        $region52: #{tpu_custom_call.1} parent=47 // pred_fallthru
          _
      $region48: #{tpu_custom_call.1} parent=5 // pred_fallthru
        _
      %p344 = scmp.le.s32.totalorder 1, %s23
      %p345 = scmp.lt.s32.totalorder %s23, 3
      %p346 = pnand %p344, %p345
      %p347 = pneg %p346
      // Predicated region
      $region53: #{tpu_custom_call.1} parent=5 // pred_check
        _
      $region54: #{tpu_custom_call.1} parent=5 // pred_check_branch
        %349 = sbr.rel (%p346) target = $region56
      $region55: #{tpu_custom_call.1} parent=5 // pred_region
        %s350 = ssub.s32 %s23, 1
        %s351 = sand.u32 %s36, 1
        %s352 = scalar_lea.sflag [#allocation3], %s351
        %s353 = sand.u32 %s36, 1
        %s354 = smul.addr %s353, 8
        %s355 = scalar_lea.vmem [#allocation2], %s354
        // Predicated region
        $region57: #{tpu_custom_call.1} parent=55 // pred_check
          %p356 = pneg %p49
        $region58: #{tpu_custom_call.1} parent=55 // pred_check_branch
          %358 = sbr.rel (%p356) target = $region60
        $region59: #{tpu_custom_call.1} parent=55 // pred_region
          %359 = dma.done %s352, 128
        $region60: #{tpu_custom_call.1} parent=55 // pred_fallthru
          _
        // Predicated region
        $region61: #{tpu_custom_call.1} parent=55 // pred_check
          %p360 = pneg %p70
        $region62: #{tpu_custom_call.1} parent=55 // pred_check_branch
          %362 = sbr.rel (%p360) target = $region64
        $region63: #{tpu_custom_call.1} parent=55 // pred_region
          %363 = dma.done [#allocation6], 8192
        $region64: #{tpu_custom_call.1} parent=55 // pred_fallthru
          _
        // Predicated region
        $region65: #{tpu_custom_call.1} parent=55 // pred_check
          %p364 = pneg %p112
        $region66: #{tpu_custom_call.1} parent=55 // pred_check_branch
          %366 = sbr.rel (%p364) target = $region68
        $region67: #{tpu_custom_call.1} parent=55 // pred_region
          %367 = dma.done [#allocation6], 8192
        $region68: #{tpu_custom_call.1} parent=55 // pred_fallthru
          _
        // Predicated region
        $region69: #{tpu_custom_call.1} parent=55 // pred_check
          %p368 = pneg %p154
        $region70: #{tpu_custom_call.1} parent=55 // pred_check_branch
          %370 = sbr.rel (%p368) target = $region72
        $region71: #{tpu_custom_call.1} parent=55 // pred_region
          %371 = dma.done [#allocation9], 8192
        $region72: #{tpu_custom_call.1} parent=55 // pred_fallthru
          _
        // Predicated region
        $region73: #{tpu_custom_call.1} parent=55 // pred_check
          %p372 = pneg %p196
        $region74: #{tpu_custom_call.1} parent=55 // pred_check_branch
          %374 = sbr.rel (%p372) target = $region76
        $region75: #{tpu_custom_call.1} parent=55 // pred_region
          %375 = dma.done [#allocation9], 8192
        $region76: #{tpu_custom_call.1} parent=55 // pred_fallthru
          _
        %s376 = sand.u32 %s36, 1
        %s377 = scalar_lea.sflag [#allocation3], %s376
        %s378 = sand.u32 %s36, 1
        %s379 = smul.addr %s378, 8
        %s380 = scalar_lea.vmem [#allocation2], %s379
        %p381 = pneg %p49
        %p382 = pneg %p46
        %p383 = pneg %p70
        %p384 = pneg %p67
        %p385 = pneg %p91
        %p386 = pneg %p88
        %p387 = pneg %p112
        %p388 = pneg %p109
        %p389 = pneg %p133
        %p390 = pneg %p130
        %p391 = pneg %p154
        %p392 = pneg %p151
        %p393 = pneg %p175
        %p394 = pneg %p172
        %p395 = pneg %p196
        %p396 = pneg %p193
        %p397 = pneg %p217
        %p398 = pneg %p214
        %p399 = pneg %p243
        %p400 = pneg %p240
        %s401 = sand.u32 %s230, 1
        %s402 = scalar_lea.sflag [#allocation4], %s401
        %s403 = sand.u32 %s230, 1
        %s404 = smul.addr %s403, 8
        %s405 = scalar_lea.vmem [#allocation11], %s404
        %v406 = vld [vmem:[%s355] sm:$0xff]
        %v407 = vld [vmem:[#allocation5] sm:$0xff]
        %v408 = vld [vmem:[#allocation5 + $0x8] sm:$0xff]
        %v409 = vld [vmem:[#allocation5 + $0x10] sm:$0xff]
        %v410 = vld [vmem:[#allocation5 + $0x18] sm:$0xff]
        %v411 = vld [vmem:[#allocation5 + $0x20] sm:$0xff]
        %v412 = vld [vmem:[#allocation5 + $0x28] sm:$0xff]
        %v413 = vld [vmem:[#allocation5 + $0x30] sm:$0xff]
        %v414 = vld [vmem:[#allocation5 + $0x38] sm:$0xff]
        %v415 = vld [vmem:[#allocation5 + $0x40] sm:$0xff]
        %v416 = vld [vmem:[#allocation5 + $0x48] sm:$0xff]
        %v417 = vld [vmem:[#allocation5 + $0x50] sm:$0xff]
        %v418 = vld [vmem:[#allocation5 + $0x58] sm:$0xff]
        %v419 = vld [vmem:[#allocation5 + $0x60] sm:$0xff]
        %v420 = vld [vmem:[#allocation5 + $0x68] sm:$0xff]
        %v421 = vld [vmem:[#allocation5 + $0x70] sm:$0xff]
        %v422 = vld [vmem:[#allocation5 + $0x78] sm:$0xff]
        %v423 = vld [vmem:[#allocation5 + $0x80] sm:$0xff]
        %v424 = vld [vmem:[#allocation5 + $0x88] sm:$0xff]
        %v425 = vld [vmem:[#allocation5 + $0x90] sm:$0xff]
        %v426 = vld [vmem:[#allocation5 + $0x98] sm:$0xff]
        %v427 = vld [vmem:[#allocation5 + $0xa0] sm:$0xff]
        %v428 = vld [vmem:[#allocation5 + $0xa8] sm:$0xff]
        %v429 = vld [vmem:[#allocation5 + $0xb0] sm:$0xff]
        %v430 = vld [vmem:[#allocation5 + $0xb8] sm:$0xff]
        %v431 = vld [vmem:[#allocation5 + $0xc0] sm:$0xff]
        %v432 = vld [vmem:[#allocation5 + $0xc8] sm:$0xff]
        %v433 = vld [vmem:[#allocation5 + $0xd0] sm:$0xff]
        %v434 = vld [vmem:[#allocation5 + $0xd8] sm:$0xff]
        %v435 = vld [vmem:[#allocation5 + $0xe0] sm:$0xff]
        %v436 = vld [vmem:[#allocation5 + $0xe8] sm:$0xff]
        %v437 = vld [vmem:[#allocation5 + $0xf0] sm:$0xff]
        %v438 = vld [vmem:[#allocation5 + $0xf8] sm:$0xff]
        %v439 = vld [vmem:[#allocation5 + $0x100] sm:$0xff]
        %v440 = vld [vmem:[#allocation5 + $0x108] sm:$0xff]
        %v441 = vld [vmem:[#allocation5 + $0x110] sm:$0xff]
        %v442 = vld [vmem:[#allocation5 + $0x118] sm:$0xff]
        %v443 = vld [vmem:[#allocation5 + $0x120] sm:$0xff]
        %v444 = vld [vmem:[#allocation5 + $0x128] sm:$0xff]
        %v445 = vld [vmem:[#allocation5 + $0x130] sm:$0xff]
        %v446 = vld [vmem:[#allocation5 + $0x138] sm:$0xff]
        %v447 = vld [vmem:[#allocation5 + $0x140] sm:$0xff]
        %v448 = vld [vmem:[#allocation5 + $0x148] sm:$0xff]
        %v449 = vld [vmem:[#allocation5 + $0x150] sm:$0xff]
        %v450 = vld [vmem:[#allocation5 + $0x158] sm:$0xff]
        %v451 = vld [vmem:[#allocation5 + $0x160] sm:$0xff]
        %v452 = vld [vmem:[#allocation5 + $0x168] sm:$0xff]
        %v453 = vld [vmem:[#allocation5 + $0x170] sm:$0xff]
        %v454 = vld [vmem:[#allocation5 + $0x178] sm:$0xff]
        %v455 = vld [vmem:[#allocation5 + $0x180] sm:$0xff]
        %v456 = vld [vmem:[#allocation5 + $0x188] sm:$0xff]
        %v457 = vld [vmem:[#allocation5 + $0x190] sm:$0xff]
        %v458 = vld [vmem:[#allocation5 + $0x198] sm:$0xff]
        %v459 = vld [vmem:[#allocation5 + $0x1a0] sm:$0xff]
        %v460 = vld [vmem:[#allocation5 + $0x1a8] sm:$0xff]
        %v461 = vld [vmem:[#allocation5 + $0x1b0] sm:$0xff]
        %v462 = vld [vmem:[#allocation5 + $0x1b8] sm:$0xff]
        %v463 = vld [vmem:[#allocation5 + $0x1c0] sm:$0xff]
        %v464 = vld [vmem:[#allocation5 + $0x1c8] sm:$0xff]
        %v465 = vld [vmem:[#allocation5 + $0x1d0] sm:$0xff]
        %v466 = vld [vmem:[#allocation5 + $0x1d8] sm:$0xff]
        %v467 = vld [vmem:[#allocation5 + $0x1e0] sm:$0xff]
        %v468 = vld [vmem:[#allocation5 + $0x1e8] sm:$0xff]
        %v469 = vld [vmem:[#allocation5 + $0x1f0] sm:$0xff]
        %v470 = vld [vmem:[#allocation5 + $0x1f8] sm:$0xff]
        %v471 = vld [vmem:[%s2] sm:$0xf]
        %v473 = vlaneseq
        %v474 = vshrl.u32 %v473, 7
        %v475 = vsub.s32 0, %v474
        %v476 = vrot.slane %v471, %v475
        %v477 = vlaneseq
        %v478 = vshrl.u32 %v477, 7
        %v479 = vsub.s32 1, %v478
        %v480 = vrot.slane %v471, %v479
        %v481 = vlaneseq
        %v482 = vshrl.u32 %v481, 7
        %v483 = vsub.s32 2, %v482
        %v484 = vrot.slane %v471, %v483
        %v485 = vlaneseq
        %v486 = vshrl.u32 %v485, 7
        %v487 = vsub.s32 3, %v486
        %v488 = vrot.slane %v471, %v487
        %493 = vmatprep.subr.mxu0 %v408
        %494 = vmatpush1.msra.mxu0 %v407
        %495 = vmatprep.subr.mxu0 %v412
        %496 = vmatpush1.msra.mxu0 %v411
        %497 = vmatprep.subr.mxu0 %v416
        %498 = vmatpush1.msra.mxu0 %v415
        %499 = vmatprep.subr.mxu0 %v420
        %500 = vmatpush1.msra.mxu0 %v419
        %501 = vmatprep.subr.mxu0 %v424
        %502 = vmatpush1.msra.mxu0 %v423
        %503 = vmatprep.subr.mxu0 %v428
        %504 = vmatpush1.msra.mxu0 %v427
        %505 = vmatprep.subr.mxu0 %v432
        %506 = vmatpush1.msra.mxu0 %v431
        %507 = vmatprep.subr.mxu0 %v436
        %508 = vmatpush1.msra.mxu0 %v435
        %509 = vmatprep.subr.mxu0 %v440
        %510 = vmatpush1.msra.mxu0 %v439
        %511 = vmatprep.subr.mxu0 %v444
        %512 = vmatpush1.msra.mxu0 %v443
        %513 = vmatprep.subr.mxu0 %v448
        %514 = vmatpush1.msra.mxu0 %v447
        %515 = vmatprep.subr.mxu0 %v452
        %516 = vmatpush1.msra.mxu0 %v451
        %517 = vmatprep.subr.mxu0 %v456
        %518 = vmatpush1.msra.mxu0 %v455
        %519 = vmatprep.subr.mxu0 %v460
        %520 = vmatpush1.msra.mxu0 %v459
        %521 = vmatprep.subr.mxu0 %v464
        %522 = vmatpush1.msra.mxu0 %v463
        %523 = vmatprep.subr.mxu0 %v468
        %524 = vmatpush1.msra.mxu0 %v467
        %525 = vmatprep.subr.mxu0 0.0
        %526 = vmatpush1.msra.mxu0 0.0
        %527 = vmatprep.subr.mxu0 0.0
        %528 = vmatpush1.msra.mxu0 0.0
        %529 = vmatprep.subr.mxu0 0.0
        %530 = vmatpush1.msra.mxu0 0.0
        %531 = vmatprep.subr.mxu0 0.0
        %532 = vmatpush1.msra.mxu0 0.0
        %533 = vmatprep.subr.mxu0 0.0
        %534 = vmatpush1.msra.mxu0 0.0
        %535 = vmatprep.subr.mxu0 0.0
        %536 = vmatpush1.msra.mxu0 0.0
        %537 = vmatprep.subr.mxu0 0.0
        %538 = vmatpush1.msra.mxu0 0.0
        %539 = vmatprep.subr.mxu0 0.0
        %540 = vmatpush1.msra.mxu0 0.0
        %541 = vmatprep.subr.mxu0 0.0
        %542 = vmatpush1.msra.mxu0 0.0
        %543 = vmatprep.subr.mxu0 0.0
        %544 = vmatpush1.msra.mxu0 0.0
        %545 = vmatprep.subr.mxu0 0.0
        %546 = vmatpush1.msra.mxu0 0.0
        %547 = vmatprep.subr.mxu0 0.0
        %548 = vmatpush1.msra.mxu0 0.0
        %549 = vmatprep.subr.mxu0 0.0
        %550 = vmatpush1.msra.mxu0 0.0
        %551 = vmatprep.subr.mxu0 0.0
        %552 = vmatpush1.msra.mxu0 0.0
        %553 = vmatprep.subr.mxu0 0.0
        %554 = vmatpush1.msra.mxu0 0.0
        %555 = vmatprep.subr.mxu0 0.0
        %556 = vmatpush1.msra.mxu0 0.0
        %557 = vmatprep.mubr.f32.mxu0 0.0
        %558 = vmatmul.mubr.f32.gmra.mrb[0].mxu0 %v406
        %v559 = vpop.f32.mrb[0].mxu0
        %v560 = vadd.f32 %v476, %v559
        %v561 = vpop.f32.mrb[0].mxu0
        %v562 = vadd.f32 %v480, %v561
        %563 = vdwg.mxu0
        %564 = vmatprep.subr.mxu0 %v410
        %565 = vmatpush1.msra.mxu0 %v409
        %566 = vmatprep.subr.mxu0 %v414
        %567 = vmatpush1.msra.mxu0 %v413
        %568 = vmatprep.subr.mxu0 %v418
        %569 = vmatpush1.msra.mxu0 %v417
        %570 = vmatprep.subr.mxu0 %v422
        %571 = vmatpush1.msra.mxu0 %v421
        %572 = vmatprep.subr.mxu0 %v426
        %573 = vmatpush1.msra.mxu0 %v425
        %574 = vmatprep.subr.mxu0 %v430
        %575 = vmatpush1.msra.mxu0 %v429
        %576 = vmatprep.subr.mxu0 %v434
        %577 = vmatpush1.msra.mxu0 %v433
        %578 = vmatprep.subr.mxu0 %v438
        %579 = vmatpush1.msra.mxu0 %v437
        %580 = vmatprep.subr.mxu0 %v442
        %581 = vmatpush1.msra.mxu0 %v441
        %582 = vmatprep.subr.mxu0 %v446
        %583 = vmatpush1.msra.mxu0 %v445
        %584 = vmatprep.subr.mxu0 %v450
        %585 = vmatpush1.msra.mxu0 %v449
        %586 = vmatprep.subr.mxu0 %v454
        %587 = vmatpush1.msra.mxu0 %v453
        %588 = vmatprep.subr.mxu0 %v458
        %589 = vmatpush1.msra.mxu0 %v457
        %590 = vmatprep.subr.mxu0 %v462
        %591 = vmatpush1.msra.mxu0 %v461
        %592 = vmatprep.subr.mxu0 %v466
        %593 = vmatpush1.msra.mxu0 %v465
        %594 = vmatprep.subr.mxu0 %v470
        %595 = vmatpush1.msra.mxu0 %v469
        %596 = vmatprep.subr.mxu0 0.0
        %597 = vmatpush1.msra.mxu0 0.0
        %598 = vmatprep.subr.mxu0 0.0
        %599 = vmatpush1.msra.mxu0 0.0
        %600 = vmatprep.subr.mxu0 0.0
        %601 = vmatpush1.msra.mxu0 0.0
        %602 = vmatprep.subr.mxu0 0.0
        %603 = vmatpush1.msra.mxu0 0.0
        %604 = vmatprep.subr.mxu0 0.0
        %605 = vmatpush1.msra.mxu0 0.0
        %606 = vmatprep.subr.mxu0 0.0
        %607 = vmatpush1.msra.mxu0 0.0
        %608 = vmatprep.subr.mxu0 0.0
        %609 = vmatpush1.msra.mxu0 0.0
        %610 = vmatprep.subr.mxu0 0.0
        %611 = vmatpush1.msra.mxu0 0.0
        %612 = vmatprep.subr.mxu0 0.0
        %613 = vmatpush1.msra.mxu0 0.0
        %614 = vmatprep.subr.mxu0 0.0
        %615 = vmatpush1.msra.mxu0 0.0
        %616 = vmatprep.subr.mxu0 0.0
        %617 = vmatpush1.msra.mxu0 0.0
        %618 = vmatprep.subr.mxu0 0.0
        %619 = vmatpush1.msra.mxu0 0.0
        %620 = vmatprep.subr.mxu0 0.0
        %621 = vmatpush1.msra.mxu0 0.0
        %622 = vmatprep.subr.mxu0 0.0
        %623 = vmatpush1.msra.mxu0 0.0
        %624 = vmatprep.subr.mxu0 0.0
        %625 = vmatpush1.msra.mxu0 0.0
        %626 = vmatprep.subr.mxu0 0.0
        %627 = vmatpush1.msra.mxu0 0.0
        %628 = vmatprep.mubr.f32.mxu0 0.0
        %629 = vmatmul.mubr.f32.gmra.mrb[0].mxu0 %v406
        %v630 = vpop.f32.mrb[0].mxu0
        %v631 = vadd.f32 %v484, %v630
        %v632 = vpop.f32.mrb[0].mxu0
        %v633 = vadd.f32 %v488, %v632
        %634 = vdwg.mxu0
        %v635 = vmax.f32 %v560, 0.0
        %v636 = vmax.f32 %v562, 0.0
        %v637 = vmax.f32 %v631, 0.0
        %v638 = vmax.f32 %v633, 0.0
        %v639 = vld [vmem:[#allocation7] sm:$0xff]
        %v640 = vld [vmem:[#allocation7 + $0x8] sm:$0xff]
        %v641 = vld [vmem:[#allocation7 + $0x10] sm:$0xff]
        %v642 = vld [vmem:[#allocation7 + $0x18] sm:$0xff]
        %v643 = vld [vmem:[#allocation7 + $0x20] sm:$0xff]
        %v644 = vld [vmem:[#allocation7 + $0x28] sm:$0xff]
        %v645 = vld [vmem:[#allocation7 + $0x30] sm:$0xff]
        %v646 = vld [vmem:[#allocation7 + $0x38] sm:$0xff]
        %v647 = vld [vmem:[#allocation7 + $0x40] sm:$0xff]
        %v648 = vld [vmem:[#allocation7 + $0x48] sm:$0xff]
        %v649 = vld [vmem:[#allocation7 + $0x50] sm:$0xff]
        %v650 = vld [vmem:[#allocation7 + $0x58] sm:$0xff]
        %v651 = vld [vmem:[#allocation7 + $0x60] sm:$0xff]
        %v652 = vld [vmem:[#allocation7 + $0x68] sm:$0xff]
        %v653 = vld [vmem:[#allocation7 + $0x70] sm:$0xff]
        %v654 = vld [vmem:[#allocation7 + $0x78] sm:$0xff]
        %v655 = vld [vmem:[#allocation7 + $0x80] sm:$0xff]
        %v656 = vld [vmem:[#allocation7 + $0x88] sm:$0xff]
        %v657 = vld [vmem:[#allocation7 + $0x90] sm:$0xff]
        %v658 = vld [vmem:[#allocation7 + $0x98] sm:$0xff]
        %v659 = vld [vmem:[#allocation7 + $0xa0] sm:$0xff]
        %v660 = vld [vmem:[#allocation7 + $0xa8] sm:$0xff]
        %v661 = vld [vmem:[#allocation7 + $0xb0] sm:$0xff]
        %v662 = vld [vmem:[#allocation7 + $0xb8] sm:$0xff]
        %v663 = vld [vmem:[#allocation7 + $0xc0] sm:$0xff]
        %v664 = vld [vmem:[#allocation7 + $0xc8] sm:$0xff]
        %v665 = vld [vmem:[#allocation7 + $0xd0] sm:$0xff]
        %v666 = vld [vmem:[#allocation7 + $0xd8] sm:$0xff]
        %v667 = vld [vmem:[#allocation7 + $0xe0] sm:$0xff]
        %v668 = vld [vmem:[#allocation7 + $0xe8] sm:$0xff]
        %v669 = vld [vmem:[#allocation7 + $0xf0] sm:$0xff]
        %v670 = vld [vmem:[#allocation7 + $0xf8] sm:$0xff]
        %v671 = vld [vmem:[#allocation7 + $0x100] sm:$0xff]
        %v672 = vld [vmem:[#allocation7 + $0x108] sm:$0xff]
        %v673 = vld [vmem:[#allocation7 + $0x110] sm:$0xff]
        %v674 = vld [vmem:[#allocation7 + $0x118] sm:$0xff]
        %v675 = vld [vmem:[#allocation7 + $0x120] sm:$0xff]
        %v676 = vld [vmem:[#allocation7 + $0x128] sm:$0xff]
        %v677 = vld [vmem:[#allocation7 + $0x130] sm:$0xff]
        %v678 = vld [vmem:[#allocation7 + $0x138] sm:$0xff]
        %v679 = vld [vmem:[#allocation7 + $0x140] sm:$0xff]
        %v680 = vld [vmem:[#allocation7 + $0x148] sm:$0xff]
        %v681 = vld [vmem:[#allocation7 + $0x150] sm:$0xff]
        %v682 = vld [vmem:[#allocation7 + $0x158] sm:$0xff]
        %v683 = vld [vmem:[#allocation7 + $0x160] sm:$0xff]
        %v684 = vld [vmem:[#allocation7 + $0x168] sm:$0xff]
        %v685 = vld [vmem:[#allocation7 + $0x170] sm:$0xff]
        %v686 = vld [vmem:[#allocation7 + $0x178] sm:$0xff]
        %v687 = vld [vmem:[#allocation7 + $0x180] sm:$0xff]
        %v688 = vld [vmem:[#allocation7 + $0x188] sm:$0xff]
        %v689 = vld [vmem:[#allocation7 + $0x190] sm:$0xff]
        %v690 = vld [vmem:[#allocation7 + $0x198] sm:$0xff]
        %v691 = vld [vmem:[#allocation7 + $0x1a0] sm:$0xff]
        %v692 = vld [vmem:[#allocation7 + $0x1a8] sm:$0xff]
        %v693 = vld [vmem:[#allocation7 + $0x1b0] sm:$0xff]
        %v694 = vld [vmem:[#allocation7 + $0x1b8] sm:$0xff]
        %v695 = vld [vmem:[#allocation7 + $0x1c0] sm:$0xff]
        %v696 = vld [vmem:[#allocation7 + $0x1c8] sm:$0xff]
        %v697 = vld [vmem:[#allocation7 + $0x1d0] sm:$0xff]
        %v698 = vld [vmem:[#allocation7 + $0x1d8] sm:$0xff]
        %v699 = vld [vmem:[#allocation7 + $0x1e0] sm:$0xff]
        %v700 = vld [vmem:[#allocation7 + $0x1e8] sm:$0xff]
        %v701 = vld [vmem:[#allocation7 + $0x1f0] sm:$0xff]
        %v702 = vld [vmem:[#allocation7 + $0x1f8] sm:$0xff]
        %v703 = vld [vmem:[%s4] sm:$0x3]
        %v705 = vlaneseq
        %v706 = vshrl.u32 %v705, 7
        %v707 = vsub.s32 0, %v706
        %v708 = vrot.slane %v703, %v707
        %v709 = vlaneseq
        %v710 = vshrl.u32 %v709, 7
        %v711 = vsub.s32 1, %v710
        %v712 = vrot.slane %v703, %v711
        %715 = vmatprep.subr.mxu0 %v640
        %716 = vmatpush1.msra.mxu0 %v639
        %717 = vmatprep.subr.mxu0 %v642
        %718 = vmatpush1.msra.mxu0 %v641
        %719 = vmatprep.subr.mxu0 %v644
        %720 = vmatpush1.msra.mxu0 %v643
        %721 = vmatprep.subr.mxu0 %v646
        %722 = vmatpush1.msra.mxu0 %v645
        %723 = vmatprep.subr.mxu0 %v648
        %724 = vmatpush1.msra.mxu0 %v647
        %725 = vmatprep.subr.mxu0 %v650
        %726 = vmatpush1.msra.mxu0 %v649
        %727 = vmatprep.subr.mxu0 %v652
        %728 = vmatpush1.msra.mxu0 %v651
        %729 = vmatprep.subr.mxu0 %v654
        %730 = vmatpush1.msra.mxu0 %v653
        %731 = vmatprep.subr.mxu0 %v656
        %732 = vmatpush1.msra.mxu0 %v655
        %733 = vmatprep.subr.mxu0 %v658
        %734 = vmatpush1.msra.mxu0 %v657
        %735 = vmatprep.subr.mxu0 %v660
        %736 = vmatpush1.msra.mxu0 %v659
        %737 = vmatprep.subr.mxu0 %v662
        %738 = vmatpush1.msra.mxu0 %v661
        %739 = vmatprep.subr.mxu0 %v664
        %740 = vmatpush1.msra.mxu0 %v663
        %741 = vmatprep.subr.mxu0 %v666
        %742 = vmatpush1.msra.mxu0 %v665
        %743 = vmatprep.subr.mxu0 %v668
        %744 = vmatpush1.msra.mxu0 %v667
        %745 = vmatprep.subr.mxu0 %v670
        %746 = vmatpush1.msra.mxu0 %v669
        %747 = vmatprep.subr.mxu0 %v672
        %748 = vmatpush1.msra.mxu0 %v671
        %749 = vmatprep.subr.mxu0 %v674
        %750 = vmatpush1.msra.mxu0 %v673
        %751 = vmatprep.subr.mxu0 %v676
        %752 = vmatpush1.msra.mxu0 %v675
        %753 = vmatprep.subr.mxu0 %v678
        %754 = vmatpush1.msra.mxu0 %v677
        %755 = vmatprep.subr.mxu0 %v680
        %756 = vmatpush1.msra.mxu0 %v679
        %757 = vmatprep.subr.mxu0 %v682
        %758 = vmatpush1.msra.mxu0 %v681
        %759 = vmatprep.subr.mxu0 %v684
        %760 = vmatpush1.msra.mxu0 %v683
        %761 = vmatprep.subr.mxu0 %v686
        %762 = vmatpush1.msra.mxu0 %v685
        %763 = vmatprep.subr.mxu0 %v688
        %764 = vmatpush1.msra.mxu0 %v687
        %765 = vmatprep.subr.mxu0 %v690
        %766 = vmatpush1.msra.mxu0 %v689
        %767 = vmatprep.subr.mxu0 %v692
        %768 = vmatpush1.msra.mxu0 %v691
        %769 = vmatprep.subr.mxu0 %v694
        %770 = vmatpush1.msra.mxu0 %v693
        %771 = vmatprep.subr.mxu0 %v696
        %772 = vmatpush1.msra.mxu0 %v695
        %773 = vmatprep.subr.mxu0 %v698
        %774 = vmatpush1.msra.mxu0 %v697
        %775 = vmatprep.subr.mxu0 %v700
        %776 = vmatpush1.msra.mxu0 %v699
        %777 = vmatprep.subr.mxu0 %v702
        %778 = vmatpush1.msra.mxu0 %v701
        %779 = vmatprep.mubr.f32.mxu0 %v636
        %780 = vmatmul.mubr.f32.gmra.mrb[0].mxu0 %v635
        %v781 = vpop.f32.mrb[0].mxu0
        %v782 = vadd.f32 %v708, %v781
        %v783 = vpop.f32.mrb[0].mxu0
        %v784 = vadd.f32 %v712, %v783
        %785 = vdwg.mxu0
        %v786 = vmax.f32 %v782, 0.0
        %v787 = vmax.f32 %v784, 0.0
        %788 = vmatprep.subr.mxu0 %v640
        %789 = vmatpush1.msra.mxu0 %v639
        %790 = vmatprep.subr.mxu0 %v642
        %791 = vmatpush1.msra.mxu0 %v641
        %792 = vmatprep.subr.mxu0 %v644
        %793 = vmatpush1.msra.mxu0 %v643
        %794 = vmatprep.subr.mxu0 %v646
        %795 = vmatpush1.msra.mxu0 %v645
        %796 = vmatprep.subr.mxu0 %v648
        %797 = vmatpush1.msra.mxu0 %v647
        %798 = vmatprep.subr.mxu0 %v650
        %799 = vmatpush1.msra.mxu0 %v649
        %800 = vmatprep.subr.mxu0 %v652
        %801 = vmatpush1.msra.mxu0 %v651
        %802 = vmatprep.subr.mxu0 %v654
        %803 = vmatpush1.msra.mxu0 %v653
        %804 = vmatprep.subr.mxu0 %v656
        %805 = vmatpush1.msra.mxu0 %v655
        %806 = vmatprep.subr.mxu0 %v658
        %807 = vmatpush1.msra.mxu0 %v657
        %808 = vmatprep.subr.mxu0 %v660
        %809 = vmatpush1.msra.mxu0 %v659
        %810 = vmatprep.subr.mxu0 %v662
        %811 = vmatpush1.msra.mxu0 %v661
        %812 = vmatprep.subr.mxu0 %v664
        %813 = vmatpush1.msra.mxu0 %v663
        %814 = vmatprep.subr.mxu0 %v666
        %815 = vmatpush1.msra.mxu0 %v665
        %816 = vmatprep.subr.mxu0 %v668
        %817 = vmatpush1.msra.mxu0 %v667
        %818 = vmatprep.subr.mxu0 %v670
        %819 = vmatpush1.msra.mxu0 %v669
        %820 = vmatprep.subr.mxu0 %v672
        %821 = vmatpush1.msra.mxu0 %v671
        %822 = vmatprep.subr.mxu0 %v674
        %823 = vmatpush1.msra.mxu0 %v673
        %824 = vmatprep.subr.mxu0 %v676
        %825 = vmatpush1.msra.mxu0 %v675
        %826 = vmatprep.subr.mxu0 %v678
        %827 = vmatpush1.msra.mxu0 %v677
        %828 = vmatprep.subr.mxu0 %v680
        %829 = vmatpush1.msra.mxu0 %v679
        %830 = vmatprep.subr.mxu0 %v682
        %831 = vmatpush1.msra.mxu0 %v681
        %832 = vmatprep.subr.mxu0 %v684
        %833 = vmatpush1.msra.mxu0 %v683
        %834 = vmatprep.subr.mxu0 %v686
        %835 = vmatpush1.msra.mxu0 %v685
        %836 = vmatprep.subr.mxu0 %v688
        %837 = vmatpush1.msra.mxu0 %v687
        %838 = vmatprep.subr.mxu0 %v690
        %839 = vmatpush1.msra.mxu0 %v689
        %840 = vmatprep.subr.mxu0 %v692
        %841 = vmatpush1.msra.mxu0 %v691
        %842 = vmatprep.subr.mxu0 %v694
        %843 = vmatpush1.msra.mxu0 %v693
        %844 = vmatprep.subr.mxu0 %v696
        %845 = vmatpush1.msra.mxu0 %v695
        %846 = vmatprep.subr.mxu0 %v698
        %847 = vmatpush1.msra.mxu0 %v697
        %848 = vmatprep.subr.mxu0 %v700
        %849 = vmatpush1.msra.mxu0 %v699
        %850 = vmatprep.subr.mxu0 %v702
        %851 = vmatpush1.msra.mxu0 %v701
        %852 = vmatprep.mubr.f32.mxu0 %v638
        %853 = vmatmul.mubr.f32.gmra.mrb[0].mxu0 %v637
        %v854 = vpop.f32.mrb[0].mxu0
        %v855 = vadd.f32 %v708, %v854
        %v856 = vpop.f32.mrb[0].mxu0
        %v857 = vadd.f32 %v712, %v856
        %858 = vdwg.mxu0
        %v859 = vmax.f32 %v855, 0.0
        %v860 = vmax.f32 %v857, 0.0
        %v861 = vld [vmem:[#allocation8] sm:$0xff]
        %v862 = vld [vmem:[#allocation8 + $0x8] sm:$0xff]
        %v863 = vld [vmem:[#allocation8 + $0x10] sm:$0xff]
        %v864 = vld [vmem:[#allocation8 + $0x18] sm:$0xff]
        %v865 = vld [vmem:[#allocation8 + $0x20] sm:$0xff]
        %v866 = vld [vmem:[#allocation8 + $0x28] sm:$0xff]
        %v867 = vld [vmem:[#allocation8 + $0x30] sm:$0xff]
        %v868 = vld [vmem:[#allocation8 + $0x38] sm:$0xff]
        %v869 = vld [vmem:[#allocation8 + $0x40] sm:$0xff]
        %v870 = vld [vmem:[#allocation8 + $0x48] sm:$0xff]
        %v871 = vld [vmem:[#allocation8 + $0x50] sm:$0xff]
        %v872 = vld [vmem:[#allocation8 + $0x58] sm:$0xff]
        %v873 = vld [vmem:[#allocation8 + $0x60] sm:$0xff]
        %v874 = vld [vmem:[#allocation8 + $0x68] sm:$0xff]
        %v875 = vld [vmem:[#allocation8 + $0x70] sm:$0xff]
        %v876 = vld [vmem:[#allocation8 + $0x78] sm:$0xff]
        %v877 = vld [vmem:[#allocation8 + $0x80] sm:$0xff]
        %v878 = vld [vmem:[#allocation8 + $0x88] sm:$0xff]
        %v879 = vld [vmem:[#allocation8 + $0x90] sm:$0xff]
        %v880 = vld [vmem:[#allocation8 + $0x98] sm:$0xff]
        %v881 = vld [vmem:[#allocation8 + $0xa0] sm:$0xff]
        %v882 = vld [vmem:[#allocation8 + $0xa8] sm:$0xff]
        %v883 = vld [vmem:[#allocation8 + $0xb0] sm:$0xff]
        %v884 = vld [vmem:[#allocation8 + $0xb8] sm:$0xff]
        %v885 = vld [vmem:[#allocation8 + $0xc0] sm:$0xff]
        %v886 = vld [vmem:[#allocation8 + $0xc8] sm:$0xff]
        %v887 = vld [vmem:[#allocation8 + $0xd0] sm:$0xff]
        %v888 = vld [vmem:[#allocation8 + $0xd8] sm:$0xff]
        %v889 = vld [vmem:[#allocation8 + $0xe0] sm:$0xff]
        %v890 = vld [vmem:[#allocation8 + $0xe8] sm:$0xff]
        %v891 = vld [vmem:[#allocation8 + $0xf0] sm:$0xff]
        %v892 = vld [vmem:[#allocation8 + $0xf8] sm:$0xff]
        %v893 = vld [vmem:[#allocation8 + $0x100] sm:$0xff]
        %v894 = vld [vmem:[#allocation8 + $0x108] sm:$0xff]
        %v895 = vld [vmem:[#allocation8 + $0x110] sm:$0xff]
        %v896 = vld [vmem:[#allocation8 + $0x118] sm:$0xff]
        %v897 = vld [vmem:[#allocation8 + $0x120] sm:$0xff]
        %v898 = vld [vmem:[#allocation8 + $0x128] sm:$0xff]
        %v899 = vld [vmem:[#allocation8 + $0x130] sm:$0xff]
        %v900 = vld [vmem:[#allocation8 + $0x138] sm:$0xff]
        %v901 = vld [vmem:[#allocation8 + $0x140] sm:$0xff]
        %v902 = vld [vmem:[#allocation8 + $0x148] sm:$0xff]
        %v903 = vld [vmem:[#allocation8 + $0x150] sm:$0xff]
        %v904 = vld [vmem:[#allocation8 + $0x158] sm:$0xff]
        %v905 = vld [vmem:[#allocation8 + $0x160] sm:$0xff]
        %v906 = vld [vmem:[#allocation8 + $0x168] sm:$0xff]
        %v907 = vld [vmem:[#allocation8 + $0x170] sm:$0xff]
        %v908 = vld [vmem:[#allocation8 + $0x178] sm:$0xff]
        %v909 = vld [vmem:[#allocation8 + $0x180] sm:$0xff]
        %v910 = vld [vmem:[#allocation8 + $0x188] sm:$0xff]
        %v911 = vld [vmem:[#allocation8 + $0x190] sm:$0xff]
        %v912 = vld [vmem:[#allocation8 + $0x198] sm:$0xff]
        %v913 = vld [vmem:[#allocation8 + $0x1a0] sm:$0xff]
        %v914 = vld [vmem:[#allocation8 + $0x1a8] sm:$0xff]
        %v915 = vld [vmem:[#allocation8 + $0x1b0] sm:$0xff]
        %v916 = vld [vmem:[#allocation8 + $0x1b8] sm:$0xff]
        %v917 = vld [vmem:[#allocation8 + $0x1c0] sm:$0xff]
        %v918 = vld [vmem:[#allocation8 + $0x1c8] sm:$0xff]
        %v919 = vld [vmem:[#allocation8 + $0x1d0] sm:$0xff]
        %v920 = vld [vmem:[#allocation8 + $0x1d8] sm:$0xff]
        %v921 = vld [vmem:[#allocation8 + $0x1e0] sm:$0xff]
        %v922 = vld [vmem:[#allocation8 + $0x1e8] sm:$0xff]
        %v923 = vld [vmem:[#allocation8 + $0x1f0] sm:$0xff]
        %v924 = vld [vmem:[#allocation8 + $0x1f8] sm:$0xff]
        %v925 = vld [vmem:[%s6] sm:$0x3]
        %v927 = vlaneseq
        %v928 = vshrl.u32 %v927, 7
        %v929 = vsub.s32 0, %v928
        %v930 = vrot.slane %v925, %v929
        %v931 = vlaneseq
        %v932 = vshrl.u32 %v931, 7
        %v933 = vsub.s32 1, %v932
        %v934 = vrot.slane %v925, %v933
        %937 = vmatprep.subr.mxu0 %v862
        %938 = vmatpush1.msra.mxu0 %v861
        %939 = vmatprep.subr.mxu0 %v864
        %940 = vmatpush1.msra.mxu0 %v863
        %941 = vmatprep.subr.mxu0 %v866
        %942 = vmatpush1.msra.mxu0 %v865
        %943 = vmatprep.subr.mxu0 %v868
        %944 = vmatpush1.msra.mxu0 %v867
        %945 = vmatprep.subr.mxu0 %v870
        %946 = vmatpush1.msra.mxu0 %v869
        %947 = vmatprep.subr.mxu0 %v872
        %948 = vmatpush1.msra.mxu0 %v871
        %949 = vmatprep.subr.mxu0 %v874
        %950 = vmatpush1.msra.mxu0 %v873
        %951 = vmatprep.subr.mxu0 %v876
        %952 = vmatpush1.msra.mxu0 %v875
        %953 = vmatprep.subr.mxu0 %v878
        %954 = vmatpush1.msra.mxu0 %v877
        %955 = vmatprep.subr.mxu0 %v880
        %956 = vmatpush1.msra.mxu0 %v879
        %957 = vmatprep.subr.mxu0 %v882
        %958 = vmatpush1.msra.mxu0 %v881
        %959 = vmatprep.subr.mxu0 %v884
        %960 = vmatpush1.msra.mxu0 %v883
        %961 = vmatprep.subr.mxu0 %v886
        %962 = vmatpush1.msra.mxu0 %v885
        %963 = vmatprep.subr.mxu0 %v888
        %964 = vmatpush1.msra.mxu0 %v887
        %965 = vmatprep.subr.mxu0 %v890
        %966 = vmatpush1.msra.mxu0 %v889
        %967 = vmatprep.subr.mxu0 %v892
        %968 = vmatpush1.msra.mxu0 %v891
        %969 = vmatprep.subr.mxu0 %v894
        %970 = vmatpush1.msra.mxu0 %v893
        %971 = vmatprep.subr.mxu0 %v896
        %972 = vmatpush1.msra.mxu0 %v895
        %973 = vmatprep.subr.mxu0 %v898
        %974 = vmatpush1.msra.mxu0 %v897
        %975 = vmatprep.subr.mxu0 %v900
        %976 = vmatpush1.msra.mxu0 %v899
        %977 = vmatprep.subr.mxu0 %v902
        %978 = vmatpush1.msra.mxu0 %v901
        %979 = vmatprep.subr.mxu0 %v904
        %980 = vmatpush1.msra.mxu0 %v903
        %981 = vmatprep.subr.mxu0 %v906
        %982 = vmatpush1.msra.mxu0 %v905
        %983 = vmatprep.subr.mxu0 %v908
        %984 = vmatpush1.msra.mxu0 %v907
        %985 = vmatprep.subr.mxu0 %v910
        %986 = vmatpush1.msra.mxu0 %v909
        %987 = vmatprep.subr.mxu0 %v912
        %988 = vmatpush1.msra.mxu0 %v911
        %989 = vmatprep.subr.mxu0 %v914
        %990 = vmatpush1.msra.mxu0 %v913
        %991 = vmatprep.subr.mxu0 %v916
        %992 = vmatpush1.msra.mxu0 %v915
        %993 = vmatprep.subr.mxu0 %v918
        %994 = vmatpush1.msra.mxu0 %v917
        %995 = vmatprep.subr.mxu0 %v920
        %996 = vmatpush1.msra.mxu0 %v919
        %997 = vmatprep.subr.mxu0 %v922
        %998 = vmatpush1.msra.mxu0 %v921
        %999 = vmatprep.subr.mxu0 %v924
        %1000 = vmatpush1.msra.mxu0 %v923
        %1001 = vmatprep.mubr.f32.mxu0 %v787
        %1002 = vmatmul.mubr.f32.gmra.mrb[0].mxu0 %v786
        %v1003 = vpop.f32.mrb[0].mxu0
        %v1004 = vadd.f32 %v930, %v1003
        %v1005 = vpop.f32.mrb[0].mxu0
        %v1006 = vadd.f32 %v934, %v1005
        %1007 = vdwg.mxu0
        %v1008 = vmax.f32 %v1004, 0.0
        %v1009 = vmax.f32 %v1006, 0.0
        %1010 = vmatprep.subr.mxu0 %v862
        %1011 = vmatpush1.msra.mxu0 %v861
        %1012 = vmatprep.subr.mxu0 %v864
        %1013 = vmatpush1.msra.mxu0 %v863
        %1014 = vmatprep.subr.mxu0 %v866
        %1015 = vmatpush1.msra.mxu0 %v865
        %1016 = vmatprep.subr.mxu0 %v868
        %1017 = vmatpush1.msra.mxu0 %v867
        %1018 = vmatprep.subr.mxu0 %v870
        %1019 = vmatpush1.msra.mxu0 %v869
        %1020 = vmatprep.subr.mxu0 %v872
        %1021 = vmatpush1.msra.mxu0 %v871
        %1022 = vmatprep.subr.mxu0 %v874
        %1023 = vmatpush1.msra.mxu0 %v873
        %1024 = vmatprep.subr.mxu0 %v876
        %1025 = vmatpush1.msra.mxu0 %v875
        %1026 = vmatprep.subr.mxu0 %v878
        %1027 = vmatpush1.msra.mxu0 %v877
        %1028 = vmatprep.subr.mxu0 %v880
        %1029 = vmatpush1.msra.mxu0 %v879
        %1030 = vmatprep.subr.mxu0 %v882
        %1031 = vmatpush1.msra.mxu0 %v881
        %1032 = vmatprep.subr.mxu0 %v884
        %1033 = vmatpush1.msra.mxu0 %v883
        %1034 = vmatprep.subr.mxu0 %v886
        %1035 = vmatpush1.msra.mxu0 %v885
        %1036 = vmatprep.subr.mxu0 %v888
        %1037 = vmatpush1.msra.mxu0 %v887
        %1038 = vmatprep.subr.mxu0 %v890
        %1039 = vmatpush1.msra.mxu0 %v889
        %1040 = vmatprep.subr.mxu0 %v892
        %1041 = vmatpush1.msra.mxu0 %v891
        %1042 = vmatprep.subr.mxu0 %v894
        %1043 = vmatpush1.msra.mxu0 %v893
        %1044 = vmatprep.subr.mxu0 %v896
        %1045 = vmatpush1.msra.mxu0 %v895
        %1046 = vmatprep.subr.mxu0 %v898
        %1047 = vmatpush1.msra.mxu0 %v897
        %1048 = vmatprep.subr.mxu0 %v900
        %1049 = vmatpush1.msra.mxu0 %v899
        %1050 = vmatprep.subr.mxu0 %v902
        %1051 = vmatpush1.msra.mxu0 %v901
        %1052 = vmatprep.subr.mxu0 %v904
        %1053 = vmatpush1.msra.mxu0 %v903
        %1054 = vmatprep.subr.mxu0 %v906
        %1055 = vmatpush1.msra.mxu0 %v905
        %1056 = vmatprep.subr.mxu0 %v908
        %1057 = vmatpush1.msra.mxu0 %v907
        %1058 = vmatprep.subr.mxu0 %v910
        %1059 = vmatpush1.msra.mxu0 %v909
        %1060 = vmatprep.subr.mxu0 %v912
        %1061 = vmatpush1.msra.mxu0 %v911
        %1062 = vmatprep.subr.mxu0 %v914
        %1063 = vmatpush1.msra.mxu0 %v913
        %1064 = vmatprep.subr.mxu0 %v916
        %1065 = vmatpush1.msra.mxu0 %v915
        %1066 = vmatprep.subr.mxu0 %v918
        %1067 = vmatpush1.msra.mxu0 %v917
        %1068 = vmatprep.subr.mxu0 %v920
        %1069 = vmatpush1.msra.mxu0 %v919
        %1070 = vmatprep.subr.mxu0 %v922
        %1071 = vmatpush1.msra.mxu0 %v921
        %1072 = vmatprep.subr.mxu0 %v924
        %1073 = vmatpush1.msra.mxu0 %v923
        %1074 = vmatprep.mubr.f32.mxu0 %v860
        %1075 = vmatmul.mubr.f32.gmra.mrb[0].mxu0 %v859
        %v1076 = vpop.f32.mrb[0].mxu0
        %v1077 = vadd.f32 %v930, %v1076
        %v1078 = vpop.f32.mrb[0].mxu0
        %v1079 = vadd.f32 %v934, %v1078
        %1080 = vdwg.mxu0
        %v1081 = vmax.f32 %v1077, 0.0
        %v1082 = vmax.f32 %v1079, 0.0
        %v1083 = vld [vmem:[#allocation10] sm:$0xff]
        %v1084 = vld [vmem:[#allocation10 + $0x8] sm:$0xff]
        %v1085 = vld [vmem:[#allocation10 + $0x10] sm:$0xff]
        %v1086 = vld [vmem:[#allocation10 + $0x18] sm:$0xff]
        %v1087 = vld [vmem:[#allocation10 + $0x20] sm:$0xff]
        %v1088 = vld [vmem:[#allocation10 + $0x28] sm:$0xff]
        %v1089 = vld [vmem:[#allocation10 + $0x30] sm:$0xff]
        %v1090 = vld [vmem:[#allocation10 + $0x38] sm:$0xff]
        %v1091 = vld [vmem:[#allocation10 + $0x40] sm:$0xff]
        %v1092 = vld [vmem:[#allocation10 + $0x48] sm:$0xff]
        %v1093 = vld [vmem:[#allocation10 + $0x50] sm:$0xff]
        %v1094 = vld [vmem:[#allocation10 + $0x58] sm:$0xff]
        %v1095 = vld [vmem:[#allocation10 + $0x60] sm:$0xff]
        %v1096 = vld [vmem:[#allocation10 + $0x68] sm:$0xff]
        %v1097 = vld [vmem:[#allocation10 + $0x70] sm:$0xff]
        %v1098 = vld [vmem:[#allocation10 + $0x78] sm:$0xff]
        %v1099 = vld [vmem:[#allocation10 + $0x80] sm:$0xff]
        %v1100 = vld [vmem:[#allocation10 + $0x88] sm:$0xff]
        %v1101 = vld [vmem:[#allocation10 + $0x90] sm:$0xff]
        %v1102 = vld [vmem:[#allocation10 + $0x98] sm:$0xff]
        %v1103 = vld [vmem:[#allocation10 + $0xa0] sm:$0xff]
        %v1104 = vld [vmem:[#allocation10 + $0xa8] sm:$0xff]
        %v1105 = vld [vmem:[#allocation10 + $0xb0] sm:$0xff]
        %v1106 = vld [vmem:[#allocation10 + $0xb8] sm:$0xff]
        %v1107 = vld [vmem:[#allocation10 + $0xc0] sm:$0xff]
        %v1108 = vld [vmem:[#allocation10 + $0xc8] sm:$0xff]
        %v1109 = vld [vmem:[#allocation10 + $0xd0] sm:$0xff]
        %v1110 = vld [vmem:[#allocation10 + $0xd8] sm:$0xff]
        %v1111 = vld [vmem:[#allocation10 + $0xe0] sm:$0xff]
        %v1112 = vld [vmem:[#allocation10 + $0xe8] sm:$0xff]
        %v1113 = vld [vmem:[#allocation10 + $0xf0] sm:$0xff]
        %v1114 = vld [vmem:[#allocation10 + $0xf8] sm:$0xff]
        %v1115 = vld [vmem:[#allocation10 + $0x100] sm:$0xff]
        %v1116 = vld [vmem:[#allocation10 + $0x108] sm:$0xff]
        %v1117 = vld [vmem:[#allocation10 + $0x110] sm:$0xff]
        %v1118 = vld [vmem:[#allocation10 + $0x118] sm:$0xff]
        %v1119 = vld [vmem:[#allocation10 + $0x120] sm:$0xff]
        %v1120 = vld [vmem:[#allocation10 + $0x128] sm:$0xff]
        %v1121 = vld [vmem:[#allocation10 + $0x130] sm:$0xff]
        %v1122 = vld [vmem:[#allocation10 + $0x138] sm:$0xff]
        %v1123 = vld [vmem:[#allocation10 + $0x140] sm:$0xff]
        %v1124 = vld [vmem:[#allocation10 + $0x148] sm:$0xff]
        %v1125 = vld [vmem:[#allocation10 + $0x150] sm:$0xff]
        %v1126 = vld [vmem:[#allocation10 + $0x158] sm:$0xff]
        %v1127 = vld [vmem:[#allocation10 + $0x160] sm:$0xff]
        %v1128 = vld [vmem:[#allocation10 + $0x168] sm:$0xff]
        %v1129 = vld [vmem:[#allocation10 + $0x170] sm:$0xff]
        %v1130 = vld [vmem:[#allocation10 + $0x178] sm:$0xff]
        %v1131 = vld [vmem:[#allocation10 + $0x180] sm:$0xff]
        %v1132 = vld [vmem:[#allocation10 + $0x188] sm:$0xff]
        %v1133 = vld [vmem:[#allocation10 + $0x190] sm:$0xff]
        %v1134 = vld [vmem:[#allocation10 + $0x198] sm:$0xff]
        %v1135 = vld [vmem:[#allocation10 + $0x1a0] sm:$0xff]
        %v1136 = vld [vmem:[#allocation10 + $0x1a8] sm:$0xff]
        %v1137 = vld [vmem:[#allocation10 + $0x1b0] sm:$0xff]
        %v1138 = vld [vmem:[#allocation10 + $0x1b8] sm:$0xff]
        %v1139 = vld [vmem:[#allocation10 + $0x1c0] sm:$0xff]
        %v1140 = vld [vmem:[#allocation10 + $0x1c8] sm:$0xff]
        %v1141 = vld [vmem:[#allocation10 + $0x1d0] sm:$0xff]
        %v1142 = vld [vmem:[#allocation10 + $0x1d8] sm:$0xff]
        %v1143 = vld [vmem:[#allocation10 + $0x1e0] sm:$0xff]
        %v1144 = vld [vmem:[#allocation10 + $0x1e8] sm:$0xff]
        %v1145 = vld [vmem:[#allocation10 + $0x1f0] sm:$0xff]
        %v1146 = vld [vmem:[#allocation10 + $0x1f8] sm:$0xff]
        %v1147 = vld [vmem:[%s8] sm:$0x1]
        %v1149 = vlaneseq
        %v1150 = vshrl.u32 %v1149, 7
        %v1151 = vsub.s32 0, %v1150
        %v1152 = vrot.slane %v1147, %v1151
        %1154 = vmatprep.subr.mxu0 0.0
        %1155 = vmatpush1.msra.mxu0 %v1083
        %1156 = vmatprep.subr.mxu0 0.0
        %1157 = vmatpush1.msra.mxu0 %v1084
        %1158 = vmatprep.subr.mxu0 0.0
        %1159 = vmatpush1.msra.mxu0 %v1085
        %1160 = vmatprep.subr.mxu0 0.0
        %1161 = vmatpush1.msra.mxu0 %v1086
        %1162 = vmatprep.subr.mxu0 0.0
        %1163 = vmatpush1.msra.mxu0 %v1087
        %1164 = vmatprep.subr.mxu0 0.0
        %1165 = vmatpush1.msra.mxu0 %v1088
        %1166 = vmatprep.subr.mxu0 0.0
        %1167 = vmatpush1.msra.mxu0 %v1089
        %1168 = vmatprep.subr.mxu0 0.0
        %1169 = vmatpush1.msra.mxu0 %v1090
        %1170 = vmatprep.subr.mxu0 0.0
        %1171 = vmatpush1.msra.mxu0 %v1091
        %1172 = vmatprep.subr.mxu0 0.0
        %1173 = vmatpush1.msra.mxu0 %v1092
        %1174 = vmatprep.subr.mxu0 0.0
        %1175 = vmatpush1.msra.mxu0 %v1093
        %1176 = vmatprep.subr.mxu0 0.0
        %1177 = vmatpush1.msra.mxu0 %v1094
        %1178 = vmatprep.subr.mxu0 0.0
        %1179 = vmatpush1.msra.mxu0 %v1095
        %1180 = vmatprep.subr.mxu0 0.0
        %1181 = vmatpush1.msra.mxu0 %v1096
        %1182 = vmatprep.subr.mxu0 0.0
        %1183 = vmatpush1.msra.mxu0 %v1097
        %1184 = vmatprep.subr.mxu0 0.0
        %1185 = vmatpush1.msra.mxu0 %v1098
        %1186 = vmatprep.subr.mxu0 0.0
        %1187 = vmatpush1.msra.mxu0 %v1099
        %1188 = vmatprep.subr.mxu0 0.0
        %1189 = vmatpush1.msra.mxu0 %v1100
        %1190 = vmatprep.subr.mxu0 0.0
        %1191 = vmatpush1.msra.mxu0 %v1101
        %1192 = vmatprep.subr.mxu0 0.0
        %1193 = vmatpush1.msra.mxu0 %v1102
        %1194 = vmatprep.subr.mxu0 0.0
        %1195 = vmatpush1.msra.mxu0 %v1103
        %1196 = vmatprep.subr.mxu0 0.0
        %1197 = vmatpush1.msra.mxu0 %v1104
        %1198 = vmatprep.subr.mxu0 0.0
        %1199 = vmatpush1.msra.mxu0 %v1105
        %1200 = vmatprep.subr.mxu0 0.0
        %1201 = vmatpush1.msra.mxu0 %v1106
        %1202 = vmatprep.subr.mxu0 0.0
        %1203 = vmatpush1.msra.mxu0 %v1107
        %1204 = vmatprep.subr.mxu0 0.0
        %1205 = vmatpush1.msra.mxu0 %v1108
        %1206 = vmatprep.subr.mxu0 0.0
        %1207 = vmatpush1.msra.mxu0 %v1109
        %1208 = vmatprep.subr.mxu0 0.0
        %1209 = vmatpush1.msra.mxu0 %v1110
        %1210 = vmatprep.subr.mxu0 0.0
        %1211 = vmatpush1.msra.mxu0 %v1111
        %1212 = vmatprep.subr.mxu0 0.0
        %1213 = vmatpush1.msra.mxu0 %v1112
        %1214 = vmatprep.subr.mxu0 0.0
        %1215 = vmatpush1.msra.mxu0 %v1113
        %1216 = vmatprep.subr.mxu0 0.0
        %1217 = vmatpush1.msra.mxu0 %v1114
        %1218 = vmatprep.mubr.f32.mxu0 %v1009
        %1219 = vmatmul.mubr.f32.gmra.mrb[0].mxu0 %v1008
        %v1220 = vpop.f32.mrb[0].mxu0
        %v1221 = vadd.f32 %v1152, %v1220
        %v1222 = vpop.f32.mrb[0].mxu0
        %1223 = vdwg.mxu0
        %1224 = vmatprep.subr.mxu0 0.0
        %1225 = vmatpush1.msra.mxu0 %v1115
        %1226 = vmatprep.subr.mxu0 0.0
        %1227 = vmatpush1.msra.mxu0 %v1116
        %1228 = vmatprep.subr.mxu0 0.0
        %1229 = vmatpush1.msra.mxu0 %v1117
        %1230 = vmatprep.subr.mxu0 0.0
        %1231 = vmatpush1.msra.mxu0 %v1118
        %1232 = vmatprep.subr.mxu0 0.0
        %1233 = vmatpush1.msra.mxu0 %v1119
        %1234 = vmatprep.subr.mxu0 0.0
        %1235 = vmatpush1.msra.mxu0 %v1120
        %1236 = vmatprep.subr.mxu0 0.0
        %1237 = vmatpush1.msra.mxu0 %v1121
        %1238 = vmatprep.subr.mxu0 0.0
        %1239 = vmatpush1.msra.mxu0 %v1122
        %1240 = vmatprep.subr.mxu0 0.0
        %1241 = vmatpush1.msra.mxu0 %v1123
        %1242 = vmatprep.subr.mxu0 0.0
        %1243 = vmatpush1.msra.mxu0 %v1124
        %1244 = vmatprep.subr.mxu0 0.0
        %1245 = vmatpush1.msra.mxu0 %v1125
        %1246 = vmatprep.subr.mxu0 0.0
        %1247 = vmatpush1.msra.mxu0 %v1126
        %1248 = vmatprep.subr.mxu0 0.0
        %1249 = vmatpush1.msra.mxu0 %v1127
        %1250 = vmatprep.subr.mxu0 0.0
        %1251 = vmatpush1.msra.mxu0 %v1128
        %1252 = vmatprep.subr.mxu0 0.0
        %1253 = vmatpush1.msra.mxu0 %v1129
        %1254 = vmatprep.subr.mxu0 0.0
        %1255 = vmatpush1.msra.mxu0 %v1130
        %1256 = vmatprep.subr.mxu0 0.0
        %1257 = vmatpush1.msra.mxu0 %v1131
        %1258 = vmatprep.subr.mxu0 0.0
        %1259 = vmatpush1.msra.mxu0 %v1132
        %1260 = vmatprep.subr.mxu0 0.0
        %1261 = vmatpush1.msra.mxu0 %v1133
        %1262 = vmatprep.subr.mxu0 0.0
        %1263 = vmatpush1.msra.mxu0 %v1134
        %1264 = vmatprep.subr.mxu0 0.0
        %1265 = vmatpush1.msra.mxu0 %v1135
        %1266 = vmatprep.subr.mxu0 0.0
        %1267 = vmatpush1.msra.mxu0 %v1136
        %1268 = vmatprep.subr.mxu0 0.0
        %1269 = vmatpush1.msra.mxu0 %v1137
        %1270 = vmatprep.subr.mxu0 0.0
        %1271 = vmatpush1.msra.mxu0 %v1138
        %1272 = vmatprep.subr.mxu0 0.0
        %1273 = vmatpush1.msra.mxu0 %v1139
        %1274 = vmatprep.subr.mxu0 0.0
        %1275 = vmatpush1.msra.mxu0 %v1140
        %1276 = vmatprep.subr.mxu0 0.0
        %1277 = vmatpush1.msra.mxu0 %v1141
        %1278 = vmatprep.subr.mxu0 0.0
        %1279 = vmatpush1.msra.mxu0 %v1142
        %1280 = vmatprep.subr.mxu0 0.0
        %1281 = vmatpush1.msra.mxu0 %v1143
        %1282 = vmatprep.subr.mxu0 0.0
        %1283 = vmatpush1.msra.mxu0 %v1144
        %1284 = vmatprep.subr.mxu0 0.0
        %1285 = vmatpush1.msra.mxu0 %v1145
        %1286 = vmatprep.subr.mxu0 0.0
        %1287 = vmatpush1.msra.mxu0 %v1146
        %1288 = vmatprep.mubr.f32.mxu0 %v1082
        %1289 = vmatmul.mubr.f32.gmra.mrb[0].mxu0 %v1081
        %v1290 = vpop.f32.mrb[0].mxu0
        %v1291 = vadd.f32 %v1221, %v1290
        %v1292 = vpop.f32.mrb[0].mxu0
        %1293 = vdwg.mxu0
        %1294 = vst [vmem:[%s405] sm:$0xff] %v1291
        %s1295 = sand.u32 %s230, 1
        %s1296 = scalar_lea.sflag [#allocation4], %s1295
        %s1297 = sand.u32 %s230, 1
        %s1298 = smul.addr %s1297, 8
        %s1299 = scalar_lea.vmem [#allocation11], %s1298
        // Predicated region
        $region77: #{tpu_custom_call.1} parent=55 // pred_check
          %p1300 = pneg %p240
        $region78: #{tpu_custom_call.1} parent=55 // pred_check_branch
          %1302 = sbr.rel (%p1300) target = $region80
        $region79: #{tpu_custom_call.1} parent=55 // pred_region
          %s1304 = ssub.s32 128, 128
          %1305 = vsyncadd %s1296, %s1304
          %s1306 = smul.addr %s28, 128
          %s1307 = scalar_lea.hbm %s9, %s1306
          %s1309 = sshll.u32 %s1299, 4
          %s1310 = int_to_ptr.vmem [resolvable:$true] %s1309
          %1312 = dma.vmem_to_hbm [thread:$0]  %s1310, 128, %s1307, %s1296
        $region80: #{tpu_custom_call.1} parent=55 // pred_fallthru
          _
      $region56: #{tpu_custom_call.1} parent=5 // pred_fallthru
        _
      %p1313 = scmp.le.s32.totalorder 2, %s23
      // Predicated region
      $region81: #{tpu_custom_call.1} parent=5 // pred_check
        %p1314 = pneg %p1313
      $region82: #{tpu_custom_call.1} parent=5 // pred_check_branch
        %1316 = sbr.rel (%p1314) target = $region84
      $region83: #{tpu_custom_call.1} parent=5 // pred_region
        %s1317 = ssub.s32 %s23, 2
        // Predicated region
        $region85: #{tpu_custom_call.1} parent=83 // pred_check
          %p1318 = pneg %p246
        $region86: #{tpu_custom_call.1} parent=83 // pred_check_branch
          %1320 = sbr.rel (%p1318) target = $region88
        $region87: #{tpu_custom_call.1} parent=83 // pred_region
          %s1321 = sand.u32 %s231, 1
          %s1322 = scalar_lea.sflag [#allocation4], %s1321
          %s1323 = sand.u32 %s231, 1
          %s1324 = smul.addr %s1323, 8
          %s1325 = scalar_lea.vmem [#allocation11], %s1324
          %1326 = dma.done %s1322, 128
        $region88: #{tpu_custom_call.1} parent=83 // pred_fallthru
          _
      $region84: #{tpu_custom_call.1} parent=5 // pred_fallthru
        _
    $region6: #{tpu_custom_call.1} parent=1 // loop_footer
      %s27 = sadd.s32 1, %s23
    $region7: #{tpu_custom_call.1} parent=1 // loop_footer_branch
      %22 = sbr.rel target = $region3
    $region8: #{tpu_custom_call.1} parent=1 // loop_exit
      _
    %1327 = vsyncpa [#allocation3], 1
    %s1328 = scalar_lea.sflag [#allocation3], 1
    %1329 = vsyncpa %s1328, 1
    %1330 = vsyncpa [#allocation6], 1
    %1331 = vsyncpa [#allocation9], 1
    %1332 = vsyncpa [#allocation4], 1
    %s1333 = scalar_lea.sflag [#allocation4], 1
    %1334 = vsyncpa %s1333, 1

</llo_original>
